<compile_context>
chip_gen: v5e
topology: v5e:2x2
jax: 0.10.0
libtpu: 0.0.40
codegen_flags: <defaults>
</compile_context>

<pallas_src>
import functools

import jax
import jax.numpy as jnp
from jax import lax
from jax.experimental import pallas as pl
from jax.experimental.pallas import tpu as pltpu

EMB_DIM = 100  # fixed by the module (emb_dim = 100)
_HIGHEST = jax.lax.Precision.HIGHEST
_UNROLL = 4  # manual unroll factor of the in-kernel time loop


def _pick_chunk(T, B, H, time_chunk, vmem_budget_bytes):
    """VMEM-budgeted time-chunk length (multiple of _UNROLL)."""
    # Per-timestep resident bytes: double-buffered gx (2 dirs, 3H lanes) and
    # output (2 dirs, H lanes) blocks, all f32.
    bytes_per_t = 2 * 2 * B * (3 * H + H) * 4
    # Chunk-independent residents: double-buffered whh/bhh_n/lengths inputs
    # plus the two (B, H) hidden-state scratches.
    fixed = 2 * 4 * (2 * H * 3 * H + 2 * H + B) + 4 * 2 * B * H
    budget_chunk = max(1, (vmem_budget_bytes - fixed) // bytes_per_t)
    chunk = min(time_chunk, budget_chunk, max(T, 1))
    chunk = max(_UNROLL, ((chunk + _UNROLL - 1) // _UNROLL) * _UNROLL)
    return int(chunk)


def _bigru_kernel(H, CHUNK, Tp,
                  gxf_ref, gxb_ref, whf_ref, whb_ref, bnf_ref, bnb_ref,
                  len_ref, outf_ref, outb_ref, hf_sc, hb_sc):
    """One time-chunk: CHUNK fused forward+backward GRU recurrence steps."""
    c = pl.program_id(0)

    @pl.when(c == 0)
    def _():
        hf_sc[...] = jnp.zeros_like(hf_sc)
        hb_sc[...] = jnp.zeros_like(hb_sc)

    B = hf_sc.shape[0]
    len_v = len_ref[...]                # (B, 1) int32
    start_b = Tp - len_v                # backward stream valid from this index
    # Hoisted broadcasts (only the n-gate b_hh lives in-kernel).
    bn_f = jnp.broadcast_to(bnf_ref[...], (B, H))
    bn_b = jnp.broadcast_to(bnb_ref[...], (B, H))
    t0 = c * CHUNK

    def sigmoid(x):  # one EUP tanh instead of exp + reciprocal
        return 0.5 * (jnp.tanh(0.5 * x) + 1.0)

    def gru_step(gx, gh, bn, h, valid):
        r = sigmoid(gx[:, 0:H] + gh[:, 0:H])
        z = sigmoid(gx[:, H:2 * H] + gh[:, H:2 * H])
        n = jnp.tanh(gx[:, 2 * H:3 * H] + r * (gh[:, 2 * H:3 * H] + bn))
        hc = (1.0 - z) * n + z * h
        out = jnp.where(valid, hc, 0.0)
        return jnp.where(valid, hc, h), out

    def one_step(t, hf, hb):
        tg = t0 + t
        valid_f = tg < len_v            # forward valid: t < length
        valid_b = tg >= start_b         # backward (reversed stream) valid
        # whh is streamed from VMEM each step (idle vld slots) instead of
        # being pinned in vregs (2 x 48 vregs would spill).
        ghf = jnp.dot(hf, whf_ref[...], preferred_element_type=jnp.float32)
        ghb = jnp.dot(hb, whb_ref[...], preferred_element_type=jnp.float32)
        hf, of = gru_step(gxf_ref[t], ghf, bn_f, hf, valid_f)
        hb, ob = gru_step(gxb_ref[t], ghb, bn_b, hb, valid_b)
        outf_ref[t] = of.astype(outf_ref.dtype)
        # Time reversal of the backward direction folded into the store index
        # (the out_spec maps this block to original-time block nc-1-c).
        outb_ref[CHUNK - 1 - t] = ob.astype(outb_ref.dtype)
        return hf, hb

    def unrolled(i, carry):
        hf, hb = carry
        base = i * _UNROLL
        for u in range(_UNROLL):        # manual unroll: LLO sees _UNROLL steps
            hf, hb = one_step(base + u, hf, hb)
        return hf, hb

    hf, hb = lax.fori_loop(0, CHUNK // _UNROLL, unrolled,
                           (hf_sc[...], hb_sc[...]))
    hf_sc[...] = hf
    hb_sc[...] = hb


def bigru_pallas(x_bte, lengths, params, time_chunk=256,
                 vmem_budget_bytes=12 * 1024 * 1024):
    """Bidirectional GRU over padded sequences. Returns (B, T, 2H)."""
    B, T, E = x_bte.shape
    H = params["wih_f"].shape[1] // 3
    lengths = lengths.astype(jnp.int32)

    CHUNK = _pick_chunk(T, B, H, time_chunk, vmem_budget_bytes)
    assert CHUNK % _UNROLL == 0
    nc = pl.cdiv(T, CHUNK)
    Tp = nc * CHUNK                                       # padded time length

    x_tbe = jnp.transpose(x_bte, (1, 0, 2)).astype(jnp.float32)   # (T, B, E)
    if Tp > T:
        x_tbe = jnp.pad(x_tbe, ((0, Tp - T), (0, 0), (0, 0)))
    x_rev = x_tbe[::-1]                                   # time-reversed input

    # Hoisted input projection (one big MXU matmul per direction, M = Tp*B).
    # b_ih and the r/z slices of b_hh are folded in here; the n-gate b_hh must
    # stay inside the in-kernel r*(...) term.
    def project(x, wih, bih, bhh):
        g = jnp.dot(x.reshape(Tp * B, E), wih,
                    preferred_element_type=jnp.float32)
        bias = bih + jnp.concatenate(
            [bhh[:, :2 * H], jnp.zeros((1, H), jnp.float32)], axis=1)
        return (g + bias).reshape(Tp, B, 3 * H)

    gx_f = project(x_tbe, params["wih_f"], params["bih_f"], params["bhh_f"])
    gx_b = project(x_rev, params["wih_b"], params["bih_b"], params["bhh_b"])
    bn_f = params["bhh_f"][:, 2 * H:]                     # (1, H)
    bn_b = params["bhh_b"][:, 2 * H:]                     # (1, H)
    len_col = lengths[:, None]                            # (B, 1) int32

    grid_spec = pltpu.PrefetchScalarGridSpec(
        num_scalar_prefetch=0,
        grid=(nc,),                                       # time chunks, serial
        in_specs=[
            pl.BlockSpec((CHUNK, B, 3 * H), lambda c: (c, 0, 0)),   # gx_f
            pl.BlockSpec((CHUNK, B, 3 * H), lambda c: (c, 0, 0)),   # gx_b
            pl.BlockSpec((H, 3 * H), lambda c: (0, 0)),             # whh_f
            pl.BlockSpec((H, 3 * H), lambda c: (0, 0)),             # whh_b
            pl.BlockSpec((1, H), lambda c: (0, 0)),                 # bhh_n f
            pl.BlockSpec((1, H), lambda c: (0, 0)),                 # bhh_n b
            pl.BlockSpec((B, 1), lambda c: (0, 0)),                 # lengths
        ],
        out_specs=[
            pl.BlockSpec((CHUNK, B, H), lambda c: (c, 0, 0)),            # fwd
            pl.BlockSpec((CHUNK, B, H), lambda c: (nc - 1 - c, 0, 0)),   # bwd
        ],
        scratch_shapes=[pltpu.VMEM((B, H), jnp.float32),   # h forward
                        pltpu.VMEM((B, H), jnp.float32)],  # h backward
    )

    out_f, out_b = pl.pallas_call(
        functools.partial(_bigru_kernel, H, CHUNK, Tp),
        out_shape=(jax.ShapeDtypeStruct((Tp, B, H), jnp.float32),
                   jax.ShapeDtypeStruct((Tp, B, H), jnp.float32)),
        grid_spec=grid_spec,
        compiler_params=pltpu.CompilerParams(
            dimension_semantics=("arbitrary",),           # serial recurrence
            vmem_limit_bytes=32 * 1024 * 1024),
    )(gx_f, gx_b, params["whh_f"], params["whh_b"], bn_f, bn_b, len_col)

    # out_b is already in original time order (reversal fused into out_spec).
    y = jnp.concatenate([out_f[:T], out_b[:T]], axis=-1)  # (T, B, 2H)
    return jnp.transpose(y, (1, 0, 2))                    # (B, T, 2H)


def bigru_forward(x, lengths, params, rnn_att=0):
    """Matches BiGRU.forward. Default rnn_att=0 returns the GRU output."""
    h = bigru_pallas(x, lengths, params)
    if rnn_att:
        # TODO(synk): rnn_att attention branch kept in plain JAX glue (not the
        # default path; the hot GRU recurrence above is the Pallas kernel).
        h = jnp.tanh(h)
        alpha = jax.nn.softmax(
            jnp.einsum("cd,btd->bct", params["U_w"], h), axis=2)
        h = jnp.einsum("bct,btd->bcd", alpha, h)
    return h


# ----------------------------- reference (plain JAX) -------------------------
def _gru_cell_ref(x, h, wih, whh, bih, bhh, H):
    gx = jnp.dot(x, wih, precision=_HIGHEST) + bih
    gh = jnp.dot(h, whh, precision=_HIGHEST) + bhh
    r = jax.nn.sigmoid(gx[:, 0:H] + gh[:, 0:H])
    z = jax.nn.sigmoid(gx[:, H:2 * H] + gh[:, H:2 * H])
    n = jnp.tanh(gx[:, 2 * H:3 * H] + r * gh[:, 2 * H:3 * H])
    return (1.0 - z) * n + z * h


def bigru_ref(x_bte, lengths, params):
    B, T, E = x_bte.shape
    H = params["wih_f"].shape[1] // 3
    x_tbe = jnp.transpose(x_bte, (1, 0, 2)).astype(jnp.float32)
    mask = (jnp.arange(T)[:, None] < lengths[None, :]
            ).astype(jnp.float32)[..., None]                          # (T, B, 1)

    def run_dir(xs, ms, wih, whh, bih, bhh):
        def step(h, inp):
            x_t, m_t = inp
            h_cand = _gru_cell_ref(x_t, h, wih, whh, bih, bhh, H)
            h_new = m_t * h_cand + (1.0 - m_t) * h
            return h_new, m_t * h_cand
        _, ys = lax.scan(step, jnp.zeros((B, H), jnp.float32), (xs, ms))
        return ys

    out_f = run_dir(x_tbe, mask,
                    params["wih_f"], params["whh_f"],
                    params["bih_f"], params["bhh_f"])
    out_b = run_dir(x_tbe[::-1], mask[::-1],
                    params["wih_b"], params["whh_b"],
                    params["bih_b"], params["bhh_b"])[::-1]
    return jnp.transpose(jnp.concatenate([out_f, out_b], -1), (1, 0, 2))


# ----------------------------- params ----------------------------------------
def init_params(key, rnn_dim=256, num_classes=4000, emb_dim=EMB_DIM):
    assert rnn_dim % 2 == 0
    H = rnn_dim // 2
    bound = 1.0 / float(H) ** 0.5
    ks = jax.random.split(key, 10)

    def u(k_, shape):
        return jax.random.uniform(k_, shape, jnp.float32, -bound, bound)

    # PyTorch nn.GRU stores weight_ih (3H, E), weight_hh (3H, H); we transpose
    # so the kernel / wrapper can right-multiply.
    params = dict(
        wih_f=u(ks[0], (3 * H, emb_dim)).T, whh_f=u(ks[1], (3 * H, H)).T,
        bih_f=u(ks[2], (1, 3 * H)), bhh_f=u(ks[3], (1, 3 * H)),
        wih_b=u(ks[4], (3 * H, emb_dim)).T, whh_b=u(ks[5], (3 * H, H)).T,
        bih_b=u(ks[6], (1, 3 * H)), bhh_b=u(ks[7], (1, 3 * H)),
    )
    # self.U = nn.Linear(rnn_dim, 4000), xavier_uniform_ on the weight.
    limit = (6.0 / (rnn_dim + num_classes)) ** 0.5
    params["U_w"] = jax.random.uniform(ks[8], (num_classes, rnn_dim),
                                       jnp.float32, -limit, limit)
    params["U_b"] = jnp.zeros((num_classes,), jnp.float32)  # unused in forward
    return params


if __name__ == "__main__":
    key = jax.random.PRNGKey(0)
    k_p, k_x = jax.random.split(key)

    B, T, E = 8, 8, EMB_DIM
    RNN_DIM = 256  # hidden per direction H = 128

    params = init_params(k_p, rnn_dim=RNN_DIM)
    x = jax.random.normal(k_x, (B, T, E), jnp.float32)
    # pack_padded_sequence (enforce_sorted=True) expects descending lengths;
    # max length == T so pad_packed_sequence returns the same T.
    lengths = jnp.array([8, 8, 7, 6, 5, 4, 3, 2], dtype=jnp.int32)

    out = bigru_forward(x, lengths, params, rnn_att=0)
    out = jax.block_until_ready(out)

    ref = bigru_ref(x, lengths, params)
    assert out.shape == (B, T, RNN_DIM), out.shape
    max_err = float(jnp.max(jnp.abs(out - ref)))
    # Kernel matmuls run at native MXU (bf16-operand) precision; the reference
    # pins Precision.HIGHEST — tolerance reflects that documented choice.
    assert max_err < 2e-2, f"mismatch vs reference: {max_err}"

    print("KERNEL_OK")
</pallas_src>

<mosaic_0001>
module attributes {stable_mosaic.version = 11 : i64} {
  func.func @_bigru_kernel(%arg0: i32, %arg1: memref<8x8x384xf32, #tpu.memory_space<vmem>>, %arg2: memref<8x8x384xf32, #tpu.memory_space<vmem>>, %arg3: memref<128x384xf32, #tpu.memory_space<vmem>>, %arg4: memref<128x384xf32, #tpu.memory_space<vmem>>, %arg5: memref<1x128xf32, #tpu.memory_space<vmem>>, %arg6: memref<1x128xf32, #tpu.memory_space<vmem>>, %arg7: memref<8x1xi32, #tpu.memory_space<vmem>>, %arg8: memref<8x8x128xf32, #tpu.memory_space<vmem>>, %arg9: memref<8x8x128xf32, #tpu.memory_space<vmem>>, %arg10: memref<8x128xf32, #tpu.memory_space<vmem>>, %arg11: memref<8x128xf32, #tpu.memory_space<vmem>>) attributes {dimension_semantics = [#tpu.dimension_semantics<arbitrary>], iteration_bounds = array<i64: 1>, scalar_prefetch = 0 : i64, scratch_operands = 2 : i64, tpu.core_type = #tpu.core_type<tc>, window_params = [{transform_indices = @transform_0, window_bounds = array<i64: 8, 8, 384>}, {transform_indices = @transform_1, window_bounds = array<i64: 8, 8, 384>}, {pipeline_mode = #tpu.pipeline_mode<synchronous>, transform_indices = @transform_2, window_bounds = array<i64: 128, 384>}, {pipeline_mode = #tpu.pipeline_mode<synchronous>, transform_indices = @transform_3, window_bounds = array<i64: 128, 384>}, {pipeline_mode = #tpu.pipeline_mode<synchronous>, transform_indices = @transform_4, window_bounds = array<i64: 1, 128>}, {pipeline_mode = #tpu.pipeline_mode<synchronous>, transform_indices = @transform_5, window_bounds = array<i64: 1, 128>}, {pipeline_mode = #tpu.pipeline_mode<synchronous>, transform_indices = @transform_6, window_bounds = array<i64: 8, 1>}, {transform_indices = @transform_7, window_bounds = array<i64: 8, 8, 128>}, {transform_indices = @transform_8, window_bounds = array<i64: 8, 8, 128>}]} {
    %c0_i32 = arith.constant 0 : i32
    %0 = arith.cmpi eq, %arg0, %c0_i32 : i32
    %1 = arith.extui %0 : i1 to i32
    %c0_i32_0 = arith.constant 0 : i32
    %2 = arith.cmpi ne, %1, %c0_i32_0 : i32
    scf.if %2 {
      %cst = arith.constant 0.000000e+00 : f32
      %19 = vector.broadcast %cst : f32 to vector<8x128xf32>
      %c0_17 = arith.constant 0 : index
      %c0_18 = arith.constant 0 : index
      %20 = vector.load %arg10[%c0_17, %c0_18] : memref<8x128xf32, #tpu.memory_space<vmem>>, vector<8x128xf32>
      tpu.vector_store %arg10[%c0_17, %c0_18], %19 {strides = array<i32>} : memref<8x128xf32, #tpu.memory_space<vmem>>, vector<8x128xf32>,
      %cst_19 = arith.constant 0.000000e+00 : f32
      %21 = vector.broadcast %cst_19 : f32 to vector<8x128xf32>
      %c0_20 = arith.constant 0 : index
      %c0_21 = arith.constant 0 : index
      %22 = vector.load %arg11[%c0_20, %c0_21] : memref<8x128xf32, #tpu.memory_space<vmem>>, vector<8x128xf32>
      tpu.vector_store %arg11[%c0_20, %c0_21], %21 {strides = array<i32>} : memref<8x128xf32, #tpu.memory_space<vmem>>, vector<8x128xf32>,
    } else {
    }
    %c0 = arith.constant 0 : index
    %c0_1 = arith.constant 0 : index
    %3 = vector.load %arg7[%c0, %c0_1] : memref<8x1xi32, #tpu.memory_space<vmem>>, vector<8x1xi32>
    %c8_i32 = arith.constant 8 : i32
    %4 = vector.broadcast %c8_i32 : i32 to vector<8x1xi32>
    %5 = arith.subi %4, %3 : vector<8x1xi32>
    %c0_2 = arith.constant 0 : index
    %c0_3 = arith.constant 0 : index
    %6 = vector.load %arg5[%c0_2, %c0_3] : memref<1x128xf32, #tpu.memory_space<vmem>>, vector<1x128xf32>
    %7 = vector.shape_cast %6 : vector<1x128xf32> to vector<1x128xf32>
    %8 = vector.broadcast %7 : vector<1x128xf32> to vector<8x128xf32>
    %c0_4 = arith.constant 0 : index
    %c0_5 = arith.constant 0 : index
    %9 = vector.load %arg6[%c0_4, %c0_5] : memref<1x128xf32, #tpu.memory_space<vmem>>, vector<1x128xf32>
    %10 = vector.shape_cast %9 : vector<1x128xf32> to vector<1x128xf32>
    %11 = vector.broadcast %10 : vector<1x128xf32> to vector<8x128xf32>
    %c8_i32_6 = arith.constant 8 : i32
    %12 = arith.muli %arg0, %c8_i32_6 : i32
    %c0_7 = arith.constant 0 : index
    %c0_8 = arith.constant 0 : index
    %13 = vector.load %arg10[%c0_7, %c0_8] : memref<8x128xf32, #tpu.memory_space<vmem>>, vector<8x128xf32>
    %c0_9 = arith.constant 0 : index
    %c0_10 = arith.constant 0 : index
    %14 = vector.load %arg11[%c0_9, %c0_10] : memref<8x128xf32, #tpu.memory_space<vmem>>, vector<8x128xf32>
    %c0_i32_11 = arith.constant 0 : i32
    %c2_i32 = arith.constant 2 : i32
    %15 = arith.addi %c0_i32_11, %c2_i32 : i32
    %c1_i32 = arith.constant 1 : i32
    %16:2 = scf.for %arg12 = %c0_i32_11 to %15 step %c1_i32 iter_args(%arg13 = %13, %arg14 = %14) -> (vector<8x128xf32>, vector<8x128xf32>)  : i32 {
      %c4_i32 = arith.constant 4 : i32
      %19 = arith.muli %arg12, %c4_i32 : i32
      %c0_i32_17 = arith.constant 0 : i32
      %20 = arith.addi %19, %c0_i32_17 : i32
      %21 = arith.addi %12, %20 : i32
      %22 = vector.broadcast %21 : i32 to vector<8x1xi32>
      %23 = arith.cmpi slt, %22, %3 : vector<8x1xi32>
      %24 = vector.broadcast %21 : i32 to vector<8x1xi32>
      %25 = arith.cmpi sge, %24, %5 : vector<8x1xi32>
      %c0_18 = arith.constant 0 : index
      %c0_19 = arith.constant 0 : index
      %26 = vector.load %arg3[%c0_18, %c0_19] : memref<128x384xf32, #tpu.memory_space<vmem>>, vector<128x384xf32>
      %cst = arith.constant dense<0.000000e+00> : vector<8x384xf32>
      %27 = tpu.matmul %arg13, %26, %cst {dimension_numbers = #tpu.dot_dimension_numbers<[1], [0], [0], [1], [0, 0, 1, 1], [], []>} : vector<8x128xf32>, vector<128x384xf32>, vector<8x384xf32> -> vector<8x384xf32>
      %c0_20 = arith.constant 0 : index
      %c0_21 = arith.constant 0 : index
      %28 = vector.load %arg4[%c0_20, %c0_21] : memref<128x384xf32, #tpu.memory_space<vmem>>, vector<128x384xf32>
      %cst_22 = arith.constant dense<0.000000e+00> : vector<8x384xf32>
      %29 = tpu.matmul %arg14, %28, %cst_22 {dimension_numbers = #tpu.dot_dimension_numbers<[1], [0], [0], [1], [0, 0, 1, 1], [], []>} : vector<8x128xf32>, vector<128x384xf32>, vector<8x384xf32> -> vector<8x384xf32>
      %30 = arith.index_cast %20 : i32 to index
      %c0_23 = arith.constant 0 : index
      %c0_24 = arith.constant 0 : index
      %31 = vector.load %arg1[%30, %c0_23, %c0_24] : memref<8x8x384xf32, #tpu.memory_space<vmem>>, vector<1x8x384xf32>
      %32 = vector.shape_cast %31 : vector<1x8x384xf32> to vector<8x384xf32>
      %33 = vector.extract_strided_slice %32 {offsets = [0, 0], sizes = [8, 128], strides = [1, 1]} : vector<8x384xf32> to vector<8x128xf32>
      %34 = vector.extract_strided_slice %27 {offsets = [0, 0], sizes = [8, 128], strides = [1, 1]} : vector<8x384xf32> to vector<8x128xf32>
      %35 = arith.addf %33, %34 : vector<8x128xf32>
      %cst_25 = arith.constant 5.000000e-01 : f32
      %36 = vector.broadcast %cst_25 : f32 to vector<8x128xf32>
      %37 = arith.mulf %36, %35 : vector<8x128xf32>
      %38 = math.tanh %37 : vector<8x128xf32>
      %cst_26 = arith.constant 1.000000e+00 : f32
      %39 = vector.broadcast %cst_26 : f32 to vector<8x128xf32>
      %40 = arith.addf %38, %39 : vector<8x128xf32>
      %cst_27 = arith.constant 5.000000e-01 : f32
      %41 = vector.broadcast %cst_27 : f32 to vector<8x128xf32>
      %42 = arith.mulf %41, %40 : vector<8x128xf32>
      %43 = vector.extract_strided_slice %32 {offsets = [0, 128], sizes = [8, 128], strides = [1, 1]} : vector<8x384xf32> to vector<8x128xf32>
      %44 = vector.extract_strided_slice %27 {offsets = [0, 128], sizes = [8, 128], strides = [1, 1]} : vector<8x384xf32> to vector<8x128xf32>
      %45 = arith.addf %43, %44 : vector<8x128xf32>
      %cst_28 = arith.constant 5.000000e-01 : f32
      %46 = vector.broadcast %cst_28 : f32 to vector<8x128xf32>
      %47 = arith.mulf %46, %45 : vector<8x128xf32>
      %48 = math.tanh %47 : vector<8x128xf32>
      %cst_29 = arith.constant 1.000000e+00 : f32
      %49 = vector.broadcast %cst_29 : f32 to vector<8x128xf32>
      %50 = arith.addf %48, %49 : vector<8x128xf32>
      %cst_30 = arith.constant 5.000000e-01 : f32
      %51 = vector.broadcast %cst_30 : f32 to vector<8x128xf32>
      %52 = arith.mulf %51, %50 : vector<8x128xf32>
      %53 = vector.extract_strided_slice %32 {offsets = [0, 256], sizes = [8, 128], strides = [1, 1]} : vector<8x384xf32> to vector<8x128xf32>
      %54 = vector.extract_strided_slice %27 {offsets = [0, 256], sizes = [8, 128], strides = [1, 1]} : vector<8x384xf32> to vector<8x128xf32>
      %55 = arith.addf %54, %8 : vector<8x128xf32>
      %56 = arith.mulf %42, %55 : vector<8x128xf32>
      %57 = arith.addf %53, %56 : vector<8x128xf32>
      %58 = math.tanh %57 : vector<8x128xf32>
      %cst_31 = arith.constant 1.000000e+00 : f32
      %59 = vector.broadcast %cst_31 : f32 to vector<8x128xf32>
      %60 = arith.subf %59, %52 : vector<8x128xf32>
      %61 = arith.mulf %60, %58 : vector<8x128xf32>
      %62 = arith.mulf %52, %arg13 : vector<8x128xf32>
      %63 = arith.addf %61, %62 : vector<8x128xf32>
      %cst_32 = arith.constant 0.000000e+00 : f32
      %64 = vector.shape_cast %23 : vector<8x1xi1> to vector<8x1xi1>
      %65 = vector.broadcast %64 : vector<8x1xi1> to vector<8x128xi1>
      %66 = vector.broadcast %cst_32 : f32 to vector<8x128xf32>
      %67 = arith.select %65, %63, %66 : vector<8x128xi1>, vector<8x128xf32>
      %68 = vector.shape_cast %23 : vector<8x1xi1> to vector<8x1xi1>
      %69 = vector.broadcast %68 : vector<8x1xi1> to vector<8x128xi1>
      %70 = arith.select %69, %63, %arg13 : vector<8x128xi1>, vector<8x128xf32>
      %71 = arith.index_cast %20 : i32 to index
      %c0_33 = arith.constant 0 : index
      %c0_34 = arith.constant 0 : index
      %72 = vector.load %arg2[%71, %c0_33, %c0_34] : memref<8x8x384xf32, #tpu.memory_space<vmem>>, vector<1x8x384xf32>
      %73 = vector.shape_cast %72 : vector<1x8x384xf32> to vector<8x384xf32>
      %74 = vector.extract_strided_slice %73 {offsets = [0, 0], sizes = [8, 128], strides = [1, 1]} : vector<8x384xf32> to vector<8x128xf32>
      %75 = vector.extract_strided_slice %29 {offsets = [0, 0], sizes = [8, 128], strides = [1, 1]} : vector<8x384xf32> to vector<8x128xf32>
      %76 = arith.addf %74, %75 : vector<8x128xf32>
      %cst_35 = arith.constant 5.000000e-01 : f32
      %77 = vector.broadcast %cst_35 : f32 to vector<8x128xf32>
      %78 = arith.mulf %77, %76 : vector<8x128xf32>
      %79 = math.tanh %78 : vector<8x128xf32>
      %cst_36 = arith.constant 1.000000e+00 : f32
      %80 = vector.broadcast %cst_36 : f32 to vector<8x128xf32>
      %81 = arith.addf %79, %80 : vector<8x128xf32>
      %cst_37 = arith.constant 5.000000e-01 : f32
      %82 = vector.broadcast %cst_37 : f32 to vector<8x128xf32>
      %83 = arith.mulf %82, %81 : vector<8x128xf32>
      %84 = vector.extract_strided_slice %73 {offsets = [0, 128], sizes = [8, 128], strides = [1, 1]} : vector<8x384xf32> to vector<8x128xf32>
      %85 = vector.extract_strided_slice %29 {offsets = [0, 128], sizes = [8, 128], strides = [1, 1]} : vector<8x384xf32> to vector<8x128xf32>
      %86 = arith.addf %84, %85 : vector<8x128xf32>
      %cst_38 = arith.constant 5.000000e-01 : f32
      %87 = vector.broadcast %cst_38 : f32 to vector<8x128xf32>
      %88 = arith.mulf %87, %86 : vector<8x128xf32>
      %89 = math.tanh %88 : vector<8x128xf32>
      %cst_39 = arith.constant 1.000000e+00 : f32
      %90 = vector.broadcast %cst_39 : f32 to vector<8x128xf32>
      %91 = arith.addf %89, %90 : vector<8x128xf32>
      %cst_40 = arith.constant 5.000000e-01 : f32
      %92 = vector.broadcast %cst_40 : f32 to vector<8x128xf32>
      %93 = arith.mulf %92, %91 : vector<8x128xf32>
      %94 = vector.extract_strided_slice %73 {offsets = [0, 256], sizes = [8, 128], strides = [1, 1]} : vector<8x384xf32> to vector<8x128xf32>
      %95 = vector.extract_strided_slice %29 {offsets = [0, 256], sizes = [8, 128], strides = [1, 1]} : vector<8x384xf32> to vector<8x128xf32>
      %96 = arith.addf %95, %11 : vector<8x128xf32>
      %97 = arith.mulf %83, %96 : vector<8x128xf32>
      %98 = arith.addf %94, %97 : vector<8x128xf32>
      %99 = math.tanh %98 : vector<8x128xf32>
      %cst_41 = arith.constant 1.000000e+00 : f32
      %100 = vector.broadcast %cst_41 : f32 to vector<8x128xf32>
      %101 = arith.subf %100, %93 : vector<8x128xf32>
      %102 = arith.mulf %101, %99 : vector<8x128xf32>
      %103 = arith.mulf %93, %arg14 : vector<8x128xf32>
      %104 = arith.addf %102, %103 : vector<8x128xf32>
      %cst_42 = arith.constant 0.000000e+00 : f32
      %105 = vector.shape_cast %25 : vector<8x1xi1> to vector<8x1xi1>
      %106 = vector.broadcast %105 : vector<8x1xi1> to vector<8x128xi1>
      %107 = vector.broadcast %cst_42 : f32 to vector<8x128xf32>
      %108 = arith.select %106, %104, %107 : vector<8x128xi1>, vector<8x128xf32>
      %109 = vector.shape_cast %25 : vector<8x1xi1> to vector<8x1xi1>
      %110 = vector.broadcast %109 : vector<8x1xi1> to vector<8x128xi1>
      %111 = arith.select %110, %104, %arg14 : vector<8x128xi1>, vector<8x128xf32>
      %112 = arith.index_cast %20 : i32 to index
      %c0_43 = arith.constant 0 : index
      %c0_44 = arith.constant 0 : index
      %113 = vector.load %arg8[%112, %c0_43, %c0_44] : memref<8x8x128xf32, #tpu.memory_space<vmem>>, vector<1x8x128xf32>
      %114 = vector.shape_cast %113 : vector<1x8x128xf32> to vector<8x128xf32>
      %115 = vector.shape_cast %67 : vector<8x128xf32> to vector<1x8x128xf32>
      tpu.vector_store %arg8[%112, %c0_43, %c0_44], %115 {strides = array<i32>} : memref<8x8x128xf32, #tpu.memory_space<vmem>>, vector<1x8x128xf32>,
      %c7_i32 = arith.constant 7 : i32
      %116 = arith.subi %c7_i32, %20 : i32
      %117 = arith.index_cast %116 : i32 to index
      %c0_45 = arith.constant 0 : index
      %c0_46 = arith.constant 0 : index
      %118 = vector.load %arg9[%117, %c0_45, %c0_46] : memref<8x8x128xf32, #tpu.memory_space<vmem>>, vector<1x8x128xf32>
      %119 = vector.shape_cast %118 : vector<1x8x128xf32> to vector<8x128xf32>
      %120 = vector.shape_cast %108 : vector<8x128xf32> to vector<1x8x128xf32>
      tpu.vector_store %arg9[%117, %c0_45, %c0_46], %120 {strides = array<i32>} : memref<8x8x128xf32, #tpu.memory_space<vmem>>, vector<1x8x128xf32>,
      %c1_i32_47 = arith.constant 1 : i32
      %121 = arith.addi %19, %c1_i32_47 : i32
      %122 = arith.addi %12, %121 : i32
      %123 = vector.broadcast %122 : i32 to vector<8x1xi32>
      %124 = arith.cmpi slt, %123, %3 : vector<8x1xi32>
      %125 = vector.broadcast %122 : i32 to vector<8x1xi32>
      %126 = arith.cmpi sge, %125, %5 : vector<8x1xi32>
      %c0_48 = arith.constant 0 : index
      %c0_49 = arith.constant 0 : index
      %127 = vector.load %arg3[%c0_48, %c0_49] : memref<128x384xf32, #tpu.memory_space<vmem>>, vector<128x384xf32>
      %cst_50 = arith.constant dense<0.000000e+00> : vector<8x384xf32>
      %128 = tpu.matmul %70, %127, %cst_50 {dimension_numbers = #tpu.dot_dimension_numbers<[1], [0], [0], [1], [0, 0, 1, 1], [], []>} : vector<8x128xf32>, vector<128x384xf32>, vector<8x384xf32> -> vector<8x384xf32>
      %c0_51 = arith.constant 0 : index
      %c0_52 = arith.constant 0 : index
      %129 = vector.load %arg4[%c0_51, %c0_52] : memref<128x384xf32, #tpu.memory_space<vmem>>, vector<128x384xf32>
      %cst_53 = arith.constant dense<0.000000e+00> : vector<8x384xf32>
      %130 = tpu.matmul %111, %129, %cst_53 {dimension_numbers = #tpu.dot_dimension_numbers<[1], [0], [0], [1], [0, 0, 1, 1], [], []>} : vector<8x128xf32>, vector<128x384xf32>, vector<8x384xf32> -> vector<8x384xf32>
      %131 = arith.index_cast %121 : i32 to index
      %c0_54 = arith.constant 0 : index
      %c0_55 = arith.constant 0 : index
      %132 = vector.load %arg1[%131, %c0_54, %c0_55] : memref<8x8x384xf32, #tpu.memory_space<vmem>>, vector<1x8x384xf32>
      %133 = vector.shape_cast %132 : vector<1x8x384xf32> to vector<8x384xf32>
      %134 = vector.extract_strided_slice %133 {offsets = [0, 0], sizes = [8, 128], strides = [1, 1]} : vector<8x384xf32> to vector<8x128xf32>
      %135 = vector.extract_strided_slice %128 {offsets = [0, 0], sizes = [8, 128], strides = [1, 1]} : vector<8x384xf32> to vector<8x128xf32>
      %136 = arith.addf %134, %135 : vector<8x128xf32>
      %cst_56 = arith.constant 5.000000e-01 : f32
      %137 = vector.broadcast %cst_56 : f32 to vector<8x128xf32>
      %138 = arith.mulf %137, %136 : vector<8x128xf32>
      %139 = math.tanh %138 : vector<8x128xf32>
      %cst_57 = arith.constant 1.000000e+00 : f32
      %140 = vector.broadcast %cst_57 : f32 to vector<8x128xf32>
      %141 = arith.addf %139, %140 : vector<8x128xf32>
      %cst_58 = arith.constant 5.000000e-01 : f32
      %142 = vector.broadcast %cst_58 : f32 to vector<8x128xf32>
      %143 = arith.mulf %142, %141 : vector<8x128xf32>
      %144 = vector.extract_strided_slice %133 {offsets = [0, 128], sizes = [8, 128], strides = [1, 1]} : vector<8x384xf32> to vector<8x128xf32>
      %145 = vector.extract_strided_slice %128 {offsets = [0, 128], sizes = [8, 128], strides = [1, 1]} : vector<8x384xf32> to vector<8x128xf32>
      %146 = arith.addf %144, %145 : vector<8x128xf32>
      %cst_59 = arith.constant 5.000000e-01 : f32
      %147 = vector.broadcast %cst_59 : f32 to vector<8x128xf32>
      %148 = arith.mulf %147, %146 : vector<8x128xf32>
      %149 = math.tanh %148 : vector<8x128xf32>
      %cst_60 = arith.constant 1.000000e+00 : f32
      %150 = vector.broadcast %cst_60 : f32 to vector<8x128xf32>
      %151 = arith.addf %149, %150 : vector<8x128xf32>
      %cst_61 = arith.constant 5.000000e-01 : f32
      %152 = vector.broadcast %cst_61 : f32 to vector<8x128xf32>
      %153 = arith.mulf %152, %151 : vector<8x128xf32>
      %154 = vector.extract_strided_slice %133 {offsets = [0, 256], sizes = [8, 128], strides = [1, 1]} : vector<8x384xf32> to vector<8x128xf32>
      %155 = vector.extract_strided_slice %128 {offsets = [0, 256], sizes = [8, 128], strides = [1, 1]} : vector<8x384xf32> to vector<8x128xf32>
      %156 = arith.addf %155, %8 : vector<8x128xf32>
      %157 = arith.mulf %143, %156 : vector<8x128xf32>
      %158 = arith.addf %154, %157 : vector<8x128xf32>
      %159 = math.tanh %158 : vector<8x128xf32>
      %cst_62 = arith.constant 1.000000e+00 : f32
      %160 = vector.broadcast %cst_62 : f32 to vector<8x128xf32>
      %161 = arith.subf %160, %153 : vector<8x128xf32>
      %162 = arith.mulf %161, %159 : vector<8x128xf32>
      %163 = arith.mulf %153, %70 : vector<8x128xf32>
      %164 = arith.addf %162, %163 : vector<8x128xf32>
      %cst_63 = arith.constant 0.000000e+00 : f32
      %165 = vector.shape_cast %124 : vector<8x1xi1> to vector<8x1xi1>
      %166 = vector.broadcast %165 : vector<8x1xi1> to vector<8x128xi1>
      %167 = vector.broadcast %cst_63 : f32 to vector<8x128xf32>
      %168 = arith.select %166, %164, %167 : vector<8x128xi1>, vector<8x128xf32>
      %169 = vector.shape_cast %124 : vector<8x1xi1> to vector<8x1xi1>
      %170 = vector.broadcast %169 : vector<8x1xi1> to vector<8x128xi1>
      %171 = arith.select %170, %164, %70 : vector<8x128xi1>, vector<8x128xf32>
      %172 = arith.index_cast %121 : i32 to index
      %c0_64 = arith.constant 0 : index
      %c0_65 = arith.constant 0 : index
      %173 = vector.load %arg2[%172, %c0_64, %c0_65] : memref<8x8x384xf32, #tpu.memory_space<vmem>>, vector<1x8x384xf32>
      %174 = vector.shape_cast %173 : vector<1x8x384xf32> to vector<8x384xf32>
      %175 = vector.extract_strided_slice %174 {offsets = [0, 0], sizes = [8, 128], strides = [1, 1]} : vector<8x384xf32> to vector<8x128xf32>
      %176 = vector.extract_strided_slice %130 {offsets = [0, 0], sizes = [8, 128], strides = [1, 1]} : vector<8x384xf32> to vector<8x128xf32>
      %177 = arith.addf %175, %176 : vector<8x128xf32>
      %cst_66 = arith.constant 5.000000e-01 : f32
      %178 = vector.broadcast %cst_66 : f32 to vector<8x128xf32>
      %179 = arith.mulf %178, %177 : vector<8x128xf32>
      %180 = math.tanh %179 : vector<8x128xf32>
      %cst_67 = arith.constant 1.000000e+00 : f32
      %181 = vector.broadcast %cst_67 : f32 to vector<8x128xf32>
      %182 = arith.addf %180, %181 : vector<8x128xf32>
      %cst_68 = arith.constant 5.000000e-01 : f32
      %183 = vector.broadcast %cst_68 : f32 to vector<8x128xf32>
      %184 = arith.mulf %183, %182 : vector<8x128xf32>
      %185 = vector.extract_strided_slice %174 {offsets = [0, 128], sizes = [8, 128], strides = [1, 1]} : vector<8x384xf32> to vector<8x128xf32>
      %186 = vector.extract_strided_slice %130 {offsets = [0, 128], sizes = [8, 128], strides = [1, 1]} : vector<8x384xf32> to vector<8x128xf32>
      %187 = arith.addf %185, %186 : vector<8x128xf32>
      %cst_69 = arith.constant 5.000000e-01 : f32
      %188 = vector.broadcast %cst_69 : f32 to vector<8x128xf32>
      %189 = arith.mulf %188, %187 : vector<8x128xf32>
      %190 = math.tanh %189 : vector<8x128xf32>
      %cst_70 = arith.constant 1.000000e+00 : f32
      %191 = vector.broadcast %cst_70 : f32 to vector<8x128xf32>
      %192 = arith.addf %190, %191 : vector<8x128xf32>
      %cst_71 = arith.constant 5.000000e-01 : f32
      %193 = vector.broadcast %cst_71 : f32 to vector<8x128xf32>
      %194 = arith.mulf %193, %192 : vector<8x128xf32>
      %195 = vector.extract_strided_slice %174 {offsets = [0, 256], sizes = [8, 128], strides = [1, 1]} : vector<8x384xf32> to vector<8x128xf32>
      %196 = vector.extract_strided_slice %130 {offsets = [0, 256], sizes = [8, 128], strides = [1, 1]} : vector<8x384xf32> to vector<8x128xf32>
      %197 = arith.addf %196, %11 : vector<8x128xf32>
      %198 = arith.mulf %184, %197 : vector<8x128xf32>
      %199 = arith.addf %195, %198 : vector<8x128xf32>
      %200 = math.tanh %199 : vector<8x128xf32>
      %cst_72 = arith.constant 1.000000e+00 : f32
      %201 = vector.broadcast %cst_72 : f32 to vector<8x128xf32>
      %202 = arith.subf %201, %194 : vector<8x128xf32>
      %203 = arith.mulf %202, %200 : vector<8x128xf32>
      %204 = arith.mulf %194, %111 : vector<8x128xf32>
      %205 = arith.addf %203, %204 : vector<8x128xf32>
      %cst_73 = arith.constant 0.000000e+00 : f32
      %206 = vector.shape_cast %126 : vector<8x1xi1> to vector<8x1xi1>
      %207 = vector.broadcast %206 : vector<8x1xi1> to vector<8x128xi1>
      %208 = vector.broadcast %cst_73 : f32 to vector<8x128xf32>
      %209 = arith.select %207, %205, %208 : vector<8x128xi1>, vector<8x128xf32>
      %210 = vector.shape_cast %126 : vector<8x1xi1> to vector<8x1xi1>
      %211 = vector.broadcast %210 : vector<8x1xi1> to vector<8x128xi1>
      %212 = arith.select %211, %205, %111 : vector<8x128xi1>, vector<8x128xf32>
      %213 = arith.index_cast %121 : i32 to index
      %c0_74 = arith.constant 0 : index
      %c0_75 = arith.constant 0 : index
      %214 = vector.load %arg8[%213, %c0_74, %c0_75] : memref<8x8x128xf32, #tpu.memory_space<vmem>>, vector<1x8x128xf32>
      %215 = vector.shape_cast %214 : vector<1x8x128xf32> to vector<8x128xf32>
      %216 = vector.shape_cast %168 : vector<8x128xf32> to vector<1x8x128xf32>
      tpu.vector_store %arg8[%213, %c0_74, %c0_75], %216 {strides = array<i32>} : memref<8x8x128xf32, #tpu.memory_space<vmem>>, vector<1x8x128xf32>,
      %c7_i32_76 = arith.constant 7 : i32
      %217 = arith.subi %c7_i32_76, %121 : i32
      %218 = arith.index_cast %217 : i32 to index
      %c0_77 = arith.constant 0 : index
      %c0_78 = arith.constant 0 : index
      %219 = vector.load %arg9[%218, %c0_77, %c0_78] : memref<8x8x128xf32, #tpu.memory_space<vmem>>, vector<1x8x128xf32>
      %220 = vector.shape_cast %219 : vector<1x8x128xf32> to vector<8x128xf32>
      %221 = vector.shape_cast %209 : vector<8x128xf32> to vector<1x8x128xf32>
      tpu.vector_store %arg9[%218, %c0_77, %c0_78], %221 {strides = array<i32>} : memref<8x8x128xf32, #tpu.memory_space<vmem>>, vector<1x8x128xf32>,
      %c2_i32_79 = arith.constant 2 : i32
      %222 = arith.addi %19, %c2_i32_79 : i32
      %223 = arith.addi %12, %222 : i32
      %224 = vector.broadcast %223 : i32 to vector<8x1xi32>
      %225 = arith.cmpi slt, %224, %3 : vector<8x1xi32>
      %226 = vector.broadcast %223 : i32 to vector<8x1xi32>
      %227 = arith.cmpi sge, %226, %5 : vector<8x1xi32>
      %c0_80 = arith.constant 0 : index
      %c0_81 = arith.constant 0 : index
      %228 = vector.load %arg3[%c0_80, %c0_81] : memref<128x384xf32, #tpu.memory_space<vmem>>, vector<128x384xf32>
      %cst_82 = arith.constant dense<0.000000e+00> : vector<8x384xf32>
      %229 = tpu.matmul %171, %228, %cst_82 {dimension_numbers = #tpu.dot_dimension_numbers<[1], [0], [0], [1], [0, 0, 1, 1], [], []>} : vector<8x128xf32>, vector<128x384xf32>, vector<8x384xf32> -> vector<8x384xf32>
      %c0_83 = arith.constant 0 : index
      %c0_84 = arith.constant 0 : index
      %230 = vector.load %arg4[%c0_83, %c0_84] : memref<128x384xf32, #tpu.memory_space<vmem>>, vector<128x384xf32>
      %cst_85 = arith.constant dense<0.000000e+00> : vector<8x384xf32>
      %231 = tpu.matmul %212, %230, %cst_85 {dimension_numbers = #tpu.dot_dimension_numbers<[1], [0], [0], [1], [0, 0, 1, 1], [], []>} : vector<8x128xf32>, vector<128x384xf32>, vector<8x384xf32> -> vector<8x384xf32>
      %232 = arith.index_cast %222 : i32 to index
      %c0_86 = arith.constant 0 : index
      %c0_87 = arith.constant 0 : index
      %233 = vector.load %arg1[%232, %c0_86, %c0_87] : memref<8x8x384xf32, #tpu.memory_space<vmem>>, vector<1x8x384xf32>
      %234 = vector.shape_cast %233 : vector<1x8x384xf32> to vector<8x384xf32>
      %235 = vector.extract_strided_slice %234 {offsets = [0, 0], sizes = [8, 128], strides = [1, 1]} : vector<8x384xf32> to vector<8x128xf32>
      %236 = vector.extract_strided_slice %229 {offsets = [0, 0], sizes = [8, 128], strides = [1, 1]} : vector<8x384xf32> to vector<8x128xf32>
      %237 = arith.addf %235, %236 : vector<8x128xf32>
      %cst_88 = arith.constant 5.000000e-01 : f32
      %238 = vector.broadcast %cst_88 : f32 to vector<8x128xf32>
      %239 = arith.mulf %238, %237 : vector<8x128xf32>
      %240 = math.tanh %239 : vector<8x128xf32>
      %cst_89 = arith.constant 1.000000e+00 : f32
      %241 = vector.broadcast %cst_89 : f32 to vector<8x128xf32>
      %242 = arith.addf %240, %241 : vector<8x128xf32>
      %cst_90 = arith.constant 5.000000e-01 : f32
      %243 = vector.broadcast %cst_90 : f32 to vector<8x128xf32>
      %244 = arith.mulf %243, %242 : vector<8x128xf32>
      %245 = vector.extract_strided_slice %234 {offsets = [0, 128], sizes = [8, 128], strides = [1, 1]} : vector<8x384xf32> to vector<8x128xf32>
      %246 = vector.extract_strided_slice %229 {offsets = [0, 128], sizes = [8, 128], strides = [1, 1]} : vector<8x384xf32> to vector<8x128xf32>
      %247 = arith.addf %245, %246 : vector<8x128xf32>
      %cst_91 = arith.constant 5.000000e-01 : f32
      %248 = vector.broadcast %cst_91 : f32 to vector<8x128xf32>
      %249 = arith.mulf %248, %247 : vector<8x128xf32>
      %250 = math.tanh %249 : vector<8x128xf32>
      %cst_92 = arith.constant 1.000000e+00 : f32
      %251 = vector.broadcast %cst_92 : f32 to vector<8x128xf32>
      %252 = arith.addf %250, %251 : vector<8x128xf32>
      %cst_93 = arith.constant 5.000000e-01 : f32
      %253 = vector.broadcast %cst_93 : f32 to vector<8x128xf32>
      %254 = arith.mulf %253, %252 : vector<8x128xf32>
      %255 = vector.extract_strided_slice %234 {offsets = [0, 256], sizes = [8, 128], strides = [1, 1]} : vector<8x384xf32> to vector<8x128xf32>
      %256 = vector.extract_strided_slice %229 {offsets = [0, 256], sizes = [8, 128], strides = [1, 1]} : vector<8x384xf32> to vector<8x128xf32>
      %257 = arith.addf %256, %8 : vector<8x128xf32>
      %258 = arith.mulf %244, %257 : vector<8x128xf32>
      %259 = arith.addf %255, %258 : vector<8x128xf32>
      %260 = math.tanh %259 : vector<8x128xf32>
      %cst_94 = arith.constant 1.000000e+00 : f32
      %261 = vector.broadcast %cst_94 : f32 to vector<8x128xf32>
      %262 = arith.subf %261, %254 : vector<8x128xf32>
      %263 = arith.mulf %262, %260 : vector<8x128xf32>
      %264 = arith.mulf %254, %171 : vector<8x128xf32>
      %265 = arith.addf %263, %264 : vector<8x128xf32>
      %cst_95 = arith.constant 0.000000e+00 : f32
      %266 = vector.shape_cast %225 : vector<8x1xi1> to vector<8x1xi1>
      %267 = vector.broadcast %266 : vector<8x1xi1> to vector<8x128xi1>
      %268 = vector.broadcast %cst_95 : f32 to vector<8x128xf32>
      %269 = arith.select %267, %265, %268 : vector<8x128xi1>, vector<8x128xf32>
      %270 = vector.shape_cast %225 : vector<8x1xi1> to vector<8x1xi1>
      %271 = vector.broadcast %270 : vector<8x1xi1> to vector<8x128xi1>
      %272 = arith.select %271, %265, %171 : vector<8x128xi1>, vector<8x128xf32>
      %273 = arith.index_cast %222 : i32 to index
      %c0_96 = arith.constant 0 : index
      %c0_97 = arith.constant 0 : index
      %274 = vector.load %arg2[%273, %c0_96, %c0_97] : memref<8x8x384xf32, #tpu.memory_space<vmem>>, vector<1x8x384xf32>
      %275 = vector.shape_cast %274 : vector<1x8x384xf32> to vector<8x384xf32>
      %276 = vector.extract_strided_slice %275 {offsets = [0, 0], sizes = [8, 128], strides = [1, 1]} : vector<8x384xf32> to vector<8x128xf32>
      %277 = vector.extract_strided_slice %231 {offsets = [0, 0], sizes = [8, 128], strides = [1, 1]} : vector<8x384xf32> to vector<8x128xf32>
      %278 = arith.addf %276, %277 : vector<8x128xf32>
      %cst_98 = arith.constant 5.000000e-01 : f32
      %279 = vector.broadcast %cst_98 : f32 to vector<8x128xf32>
      %280 = arith.mulf %279, %278 : vector<8x128xf32>
      %281 = math.tanh %280 : vector<8x128xf32>
      %cst_99 = arith.constant 1.000000e+00 : f32
      %282 = vector.broadcast %cst_99 : f32 to vector<8x128xf32>
      %283 = arith.addf %281, %282 : vector<8x128xf32>
      %cst_100 = arith.constant 5.000000e-01 : f32
      %284 = vector.broadcast %cst_100 : f32 to vector<8x128xf32>
      %285 = arith.mulf %284, %283 : vector<8x128xf32>
      %286 = vector.extract_strided_slice %275 {offsets = [0, 128], sizes = [8, 128], strides = [1, 1]} : vector<8x384xf32> to vector<8x128xf32>
      %287 = vector.extract_strided_slice %231 {offsets = [0, 128], sizes = [8, 128], strides = [1, 1]} : vector<8x384xf32> to vector<8x128xf32>
      %288 = arith.addf %286, %287 : vector<8x128xf32>
      %cst_101 = arith.constant 5.000000e-01 : f32
      %289 = vector.broadcast %cst_101 : f32 to vector<8x128xf32>
      %290 = arith.mulf %289, %288 : vector<8x128xf32>
      %291 = math.tanh %290 : vector<8x128xf32>
      %cst_102 = arith.constant 1.000000e+00 : f32
      %292 = vector.broadcast %cst_102 : f32 to vector<8x128xf32>
      %293 = arith.addf %291, %292 : vector<8x128xf32>
      %cst_103 = arith.constant 5.000000e-01 : f32
      %294 = vector.broadcast %cst_103 : f32 to vector<8x128xf32>
      %295 = arith.mulf %294, %293 : vector<8x128xf32>
      %296 = vector.extract_strided_slice %275 {offsets = [0, 256], sizes = [8, 128], strides = [1, 1]} : vector<8x384xf32> to vector<8x128xf32>
      %297 = vector.extract_strided_slice %231 {offsets = [0, 256], sizes = [8, 128], strides = [1, 1]} : vector<8x384xf32> to vector<8x128xf32>
      %298 = arith.addf %297, %11 : vector<8x128xf32>
      %299 = arith.mulf %285, %298 : vector<8x128xf32>
      %300 = arith.addf %296, %299 : vector<8x128xf32>
      %301 = math.tanh %300 : vector<8x128xf32>
      %cst_104 = arith.constant 1.000000e+00 : f32
      %302 = vector.broadcast %cst_104 : f32 to vector<8x128xf32>
      %303 = arith.subf %302, %295 : vector<8x128xf32>
      %304 = arith.mulf %303, %301 : vector<8x128xf32>
      %305 = arith.mulf %295, %212 : vector<8x128xf32>
      %306 = arith.addf %304, %305 : vector<8x128xf32>
      %cst_105 = arith.constant 0.000000e+00 : f32
      %307 = vector.shape_cast %227 : vector<8x1xi1> to vector<8x1xi1>
      %308 = vector.broadcast %307 : vector<8x1xi1> to vector<8x128xi1>
      %309 = vector.broadcast %cst_105 : f32 to vector<8x128xf32>
      %310 = arith.select %308, %306, %309 : vector<8x128xi1>, vector<8x128xf32>
      %311 = vector.shape_cast %227 : vector<8x1xi1> to vector<8x1xi1>
      %312 = vector.broadcast %311 : vector<8x1xi1> to vector<8x128xi1>
      %313 = arith.select %312, %306, %212 : vector<8x128xi1>, vector<8x128xf32>
      %314 = arith.index_cast %222 : i32 to index
      %c0_106 = arith.constant 0 : index
      %c0_107 = arith.constant 0 : index
      %315 = vector.load %arg8[%314, %c0_106, %c0_107] : memref<8x8x128xf32, #tpu.memory_space<vmem>>, vector<1x8x128xf32>
      %316 = vector.shape_cast %315 : vector<1x8x128xf32> to vector<8x128xf32>
      %317 = vector.shape_cast %269 : vector<8x128xf32> to vector<1x8x128xf32>
      tpu.vector_store %arg8[%314, %c0_106, %c0_107], %317 {strides = array<i32>} : memref<8x8x128xf32, #tpu.memory_space<vmem>>, vector<1x8x128xf32>,
      %c7_i32_108 = arith.constant 7 : i32
      %318 = arith.subi %c7_i32_108, %222 : i32
      %319 = arith.index_cast %318 : i32 to index
      %c0_109 = arith.constant 0 : index
      %c0_110 = arith.constant 0 : index
      %320 = vector.load %arg9[%319, %c0_109, %c0_110] : memref<8x8x128xf32, #tpu.memory_space<vmem>>, vector<1x8x128xf32>
      %321 = vector.shape_cast %320 : vector<1x8x128xf32> to vector<8x128xf32>
      %322 = vector.shape_cast %310 : vector<8x128xf32> to vector<1x8x128xf32>
      tpu.vector_store %arg9[%319, %c0_109, %c0_110], %322 {strides = array<i32>} : memref<8x8x128xf32, #tpu.memory_space<vmem>>, vector<1x8x128xf32>,
      %c3_i32 = arith.constant 3 : i32
      %323 = arith.addi %19, %c3_i32 : i32
      %324 = arith.addi %12, %323 : i32
      %325 = vector.broadcast %324 : i32 to vector<8x1xi32>
      %326 = arith.cmpi slt, %325, %3 : vector<8x1xi32>
      %327 = vector.broadcast %324 : i32 to vector<8x1xi32>
      %328 = arith.cmpi sge, %327, %5 : vector<8x1xi32>
      %c0_111 = arith.constant 0 : index
      %c0_112 = arith.constant 0 : index
      %329 = vector.load %arg3[%c0_111, %c0_112] : memref<128x384xf32, #tpu.memory_space<vmem>>, vector<128x384xf32>
      %cst_113 = arith.constant dense<0.000000e+00> : vector<8x384xf32>
      %330 = tpu.matmul %272, %329, %cst_113 {dimension_numbers = #tpu.dot_dimension_numbers<[1], [0], [0], [1], [0, 0, 1, 1], [], []>} : vector<8x128xf32>, vector<128x384xf32>, vector<8x384xf32> -> vector<8x384xf32>
      %c0_114 = arith.constant 0 : index
      %c0_115 = arith.constant 0 : index
      %331 = vector.load %arg4[%c0_114, %c0_115] : memref<128x384xf32, #tpu.memory_space<vmem>>, vector<128x384xf32>
      %cst_116 = arith.constant dense<0.000000e+00> : vector<8x384xf32>
      %332 = tpu.matmul %313, %331, %cst_116 {dimension_numbers = #tpu.dot_dimension_numbers<[1], [0], [0], [1], [0, 0, 1, 1], [], []>} : vector<8x128xf32>, vector<128x384xf32>, vector<8x384xf32> -> vector<8x384xf32>
      %333 = arith.index_cast %323 : i32 to index
      %c0_117 = arith.constant 0 : index
      %c0_118 = arith.constant 0 : index
      %334 = vector.load %arg1[%333, %c0_117, %c0_118] : memref<8x8x384xf32, #tpu.memory_space<vmem>>, vector<1x8x384xf32>
      %335 = vector.shape_cast %334 : vector<1x8x384xf32> to vector<8x384xf32>
      %336 = vector.extract_strided_slice %335 {offsets = [0, 0], sizes = [8, 128], strides = [1, 1]} : vector<8x384xf32> to vector<8x128xf32>
      %337 = vector.extract_strided_slice %330 {offsets = [0, 0], sizes = [8, 128], strides = [1, 1]} : vector<8x384xf32> to vector<8x128xf32>
      %338 = arith.addf %336, %337 : vector<8x128xf32>
      %cst_119 = arith.constant 5.000000e-01 : f32
      %339 = vector.broadcast %cst_119 : f32 to vector<8x128xf32>
      %340 = arith.mulf %339, %338 : vector<8x128xf32>
      %341 = math.tanh %340 : vector<8x128xf32>
      %cst_120 = arith.constant 1.000000e+00 : f32
      %342 = vector.broadcast %cst_120 : f32 to vector<8x128xf32>
      %343 = arith.addf %341, %342 : vector<8x128xf32>
      %cst_121 = arith.constant 5.000000e-01 : f32
      %344 = vector.broadcast %cst_121 : f32 to vector<8x128xf32>
      %345 = arith.mulf %344, %343 : vector<8x128xf32>
      %346 = vector.extract_strided_slice %335 {offsets = [0, 128], sizes = [8, 128], strides = [1, 1]} : vector<8x384xf32> to vector<8x128xf32>
      %347 = vector.extract_strided_slice %330 {offsets = [0, 128], sizes = [8, 128], strides = [1, 1]} : vector<8x384xf32> to vector<8x128xf32>
      %348 = arith.addf %346, %347 : vector<8x128xf32>
      %cst_122 = arith.constant 5.000000e-01 : f32
      %349 = vector.broadcast %cst_122 : f32 to vector<8x128xf32>
      %350 = arith.mulf %349, %348 : vector<8x128xf32>
      %351 = math.tanh %350 : vector<8x128xf32>
      %cst_123 = arith.constant 1.000000e+00 : f32
      %352 = vector.broadcast %cst_123 : f32 to vector<8x128xf32>
      %353 = arith.addf %351, %352 : vector<8x128xf32>
      %cst_124 = arith.constant 5.000000e-01 : f32
      %354 = vector.broadcast %cst_124 : f32 to vector<8x128xf32>
      %355 = arith.mulf %354, %353 : vector<8x128xf32>
      %356 = vector.extract_strided_slice %335 {offsets = [0, 256], sizes = [8, 128], strides = [1, 1]} : vector<8x384xf32> to vector<8x128xf32>
      %357 = vector.extract_strided_slice %330 {offsets = [0, 256], sizes = [8, 128], strides = [1, 1]} : vector<8x384xf32> to vector<8x128xf32>
      %358 = arith.addf %357, %8 : vector<8x128xf32>
      %359 = arith.mulf %345, %358 : vector<8x128xf32>
      %360 = arith.addf %356, %359 : vector<8x128xf32>
      %361 = math.tanh %360 : vector<8x128xf32>
      %cst_125 = arith.constant 1.000000e+00 : f32
      %362 = vector.broadcast %cst_125 : f32 to vector<8x128xf32>
      %363 = arith.subf %362, %355 : vector<8x128xf32>
      %364 = arith.mulf %363, %361 : vector<8x128xf32>
      %365 = arith.mulf %355, %272 : vector<8x128xf32>
      %366 = arith.addf %364, %365 : vector<8x128xf32>
      %cst_126 = arith.constant 0.000000e+00 : f32
      %367 = vector.shape_cast %326 : vector<8x1xi1> to vector<8x1xi1>
      %368 = vector.broadcast %367 : vector<8x1xi1> to vector<8x128xi1>
      %369 = vector.broadcast %cst_126 : f32 to vector<8x128xf32>
      %370 = arith.select %368, %366, %369 : vector<8x128xi1>, vector<8x128xf32>
      %371 = vector.shape_cast %326 : vector<8x1xi1> to vector<8x1xi1>
      %372 = vector.broadcast %371 : vector<8x1xi1> to vector<8x128xi1>
      %373 = arith.select %372, %366, %272 : vector<8x128xi1>, vector<8x128xf32>
      %374 = arith.index_cast %323 : i32 to index
      %c0_127 = arith.constant 0 : index
      %c0_128 = arith.constant 0 : index
      %375 = vector.load %arg2[%374, %c0_127, %c0_128] : memref<8x8x384xf32, #tpu.memory_space<vmem>>, vector<1x8x384xf32>
      %376 = vector.shape_cast %375 : vector<1x8x384xf32> to vector<8x384xf32>
      %377 = vector.extract_strided_slice %376 {offsets = [0, 0], sizes = [8, 128], strides = [1, 1]} : vector<8x384xf32> to vector<8x128xf32>
      %378 = vector.extract_strided_slice %332 {offsets = [0, 0], sizes = [8, 128], strides = [1, 1]} : vector<8x384xf32> to vector<8x128xf32>
      %379 = arith.addf %377, %378 : vector<8x128xf32>
      %cst_129 = arith.constant 5.000000e-01 : f32
      %380 = vector.broadcast %cst_129 : f32 to vector<8x128xf32>
      %381 = arith.mulf %380, %379 : vector<8x128xf32>
      %382 = math.tanh %381 : vector<8x128xf32>
      %cst_130 = arith.constant 1.000000e+00 : f32
      %383 = vector.broadcast %cst_130 : f32 to vector<8x128xf32>
      %384 = arith.addf %382, %383 : vector<8x128xf32>
      %cst_131 = arith.constant 5.000000e-01 : f32
      %385 = vector.broadcast %cst_131 : f32 to vector<8x128xf32>
      %386 = arith.mulf %385, %384 : vector<8x128xf32>
      %387 = vector.extract_strided_slice %376 {offsets = [0, 128], sizes = [8, 128], strides = [1, 1]} : vector<8x384xf32> to vector<8x128xf32>
      %388 = vector.extract_strided_slice %332 {offsets = [0, 128], sizes = [8, 128], strides = [1, 1]} : vector<8x384xf32> to vector<8x128xf32>
      %389 = arith.addf %387, %388 : vector<8x128xf32>
      %cst_132 = arith.constant 5.000000e-01 : f32
      %390 = vector.broadcast %cst_132 : f32 to vector<8x128xf32>
      %391 = arith.mulf %390, %389 : vector<8x128xf32>
      %392 = math.tanh %391 : vector<8x128xf32>
      %cst_133 = arith.constant 1.000000e+00 : f32
      %393 = vector.broadcast %cst_133 : f32 to vector<8x128xf32>
      %394 = arith.addf %392, %393 : vector<8x128xf32>
      %cst_134 = arith.constant 5.000000e-01 : f32
      %395 = vector.broadcast %cst_134 : f32 to vector<8x128xf32>
      %396 = arith.mulf %395, %394 : vector<8x128xf32>
      %397 = vector.extract_strided_slice %376 {offsets = [0, 256], sizes = [8, 128], strides = [1, 1]} : vector<8x384xf32> to vector<8x128xf32>
      %398 = vector.extract_strided_slice %332 {offsets = [0, 256], sizes = [8, 128], strides = [1, 1]} : vector<8x384xf32> to vector<8x128xf32>
      %399 = arith.addf %398, %11 : vector<8x128xf32>
      %400 = arith.mulf %386, %399 : vector<8x128xf32>
      %401 = arith.addf %397, %400 : vector<8x128xf32>
      %402 = math.tanh %401 : vector<8x128xf32>
      %cst_135 = arith.constant 1.000000e+00 : f32
      %403 = vector.broadcast %cst_135 : f32 to vector<8x128xf32>
      %404 = arith.subf %403, %396 : vector<8x128xf32>
      %405 = arith.mulf %404, %402 : vector<8x128xf32>
      %406 = arith.mulf %396, %313 : vector<8x128xf32>
      %407 = arith.addf %405, %406 : vector<8x128xf32>
      %cst_136 = arith.constant 0.000000e+00 : f32
      %408 = vector.shape_cast %328 : vector<8x1xi1> to vector<8x1xi1>
      %409 = vector.broadcast %408 : vector<8x1xi1> to vector<8x128xi1>
      %410 = vector.broadcast %cst_136 : f32 to vector<8x128xf32>
      %411 = arith.select %409, %407, %410 : vector<8x128xi1>, vector<8x128xf32>
      %412 = vector.shape_cast %328 : vector<8x1xi1> to vector<8x1xi1>
      %413 = vector.broadcast %412 : vector<8x1xi1> to vector<8x128xi1>
      %414 = arith.select %413, %407, %313 : vector<8x128xi1>, vector<8x128xf32>
      %415 = arith.index_cast %323 : i32 to index
      %c0_137 = arith.constant 0 : index
      %c0_138 = arith.constant 0 : index
      %416 = vector.load %arg8[%415, %c0_137, %c0_138] : memref<8x8x128xf32, #tpu.memory_space<vmem>>, vector<1x8x128xf32>
      %417 = vector.shape_cast %416 : vector<1x8x128xf32> to vector<8x128xf32>
      %418 = vector.shape_cast %370 : vector<8x128xf32> to vector<1x8x128xf32>
      tpu.vector_store %arg8[%415, %c0_137, %c0_138], %418 {strides = array<i32>} : memref<8x8x128xf32, #tpu.memory_space<vmem>>, vector<1x8x128xf32>,
      %c7_i32_139 = arith.constant 7 : i32
      %419 = arith.subi %c7_i32_139, %323 : i32
      %420 = arith.index_cast %419 : i32 to index
      %c0_140 = arith.constant 0 : index
      %c0_141 = arith.constant 0 : index
      %421 = vector.load %arg9[%420, %c0_140, %c0_141] : memref<8x8x128xf32, #tpu.memory_space<vmem>>, vector<1x8x128xf32>
      %422 = vector.shape_cast %421 : vector<1x8x128xf32> to vector<8x128xf32>
      %423 = vector.shape_cast %411 : vector<8x128xf32> to vector<1x8x128xf32>
      tpu.vector_store %arg9[%420, %c0_140, %c0_141], %423 {strides = array<i32>} : memref<8x8x128xf32, #tpu.memory_space<vmem>>, vector<1x8x128xf32>,
      scf.yield %373, %414 : vector<8x128xf32>, vector<8x128xf32>
    }
    %c2_i32_12 = arith.constant 2 : i32
    %c0_13 = arith.constant 0 : index
    %c0_14 = arith.constant 0 : index
    %17 = vector.load %arg10[%c0_13, %c0_14] : memref<8x128xf32, #tpu.memory_space<vmem>>, vector<8x128xf32>
    tpu.vector_store %arg10[%c0_13, %c0_14], %16#0 {strides = array<i32>} : memref<8x128xf32, #tpu.memory_space<vmem>>, vector<8x128xf32>,
    %c0_15 = arith.constant 0 : index
    %c0_16 = arith.constant 0 : index
    %18 = vector.load %arg11[%c0_15, %c0_16] : memref<8x128xf32, #tpu.memory_space<vmem>>, vector<8x128xf32>
    tpu.vector_store %arg11[%c0_15, %c0_16], %16#1 {strides = array<i32>} : memref<8x128xf32, #tpu.memory_space<vmem>>, vector<8x128xf32>,
    return
  }
  func.func @transform_0(%arg0: i32) -> (i32, i32, i32) {
    %c0_i32 = arith.constant 0 : i32
    %c0_i32_0 = arith.constant 0 : i32
    %c0_i32_1 = arith.constant 0 : i32
    return %arg0, %c0_i32, %c0_i32_0 : i32, i32, i32
  }
  func.func @transform_1(%arg0: i32) -> (i32, i32, i32) {
    %c0_i32 = arith.constant 0 : i32
    %c0_i32_0 = arith.constant 0 : i32
    %c0_i32_1 = arith.constant 0 : i32
    return %arg0, %c0_i32, %c0_i32_0 : i32, i32, i32
  }
  func.func @transform_2(%arg0: i32) -> (i32, i32) {
    %c0_i32 = arith.constant 0 : i32
    %c0_i32_0 = arith.constant 0 : i32
    %c0_i32_1 = arith.constant 0 : i32
    return %c0_i32, %c0_i32_0 : i32, i32
  }
  func.func @transform_3(%arg0: i32) -> (i32, i32) {
    %c0_i32 = arith.constant 0 : i32
    %c0_i32_0 = arith.constant 0 : i32
    %c0_i32_1 = arith.constant 0 : i32
    return %c0_i32, %c0_i32_0 : i32, i32
  }
  func.func @transform_4(%arg0: i32) -> (i32, i32) {
    %c0_i32 = arith.constant 0 : i32
    %c0_i32_0 = arith.constant 0 : i32
    %c0_i32_1 = arith.constant 0 : i32
    return %c0_i32, %c0_i32_0 : i32, i32
  }
  func.func @transform_5(%arg0: i32) -> (i32, i32) {
    %c0_i32 = arith.constant 0 : i32
    %c0_i32_0 = arith.constant 0 : i32
    %c0_i32_1 = arith.constant 0 : i32
    return %c0_i32, %c0_i32_0 : i32, i32
  }
  func.func @transform_6(%arg0: i32) -> (i32, i32) {
    %c0_i32 = arith.constant 0 : i32
    %c0_i32_0 = arith.constant 0 : i32
    %c0_i32_1 = arith.constant 0 : i32
    return %c0_i32, %c0_i32_0 : i32, i32
  }
  func.func @transform_7(%arg0: i32) -> (i32, i32, i32) {
    %c0_i32 = arith.constant 0 : i32
    %c0_i32_0 = arith.constant 0 : i32
    %c0_i32_1 = arith.constant 0 : i32
    return %arg0, %c0_i32, %c0_i32_0 : i32, i32, i32
  }
  func.func @transform_8(%arg0: i32) -> (i32, i32, i32) {
    %c0_i32 = arith.constant 0 : i32
    %0 = arith.subi %c0_i32, %arg0 : i32
    %c0_i32_0 = arith.constant 0 : i32
    %c0_i32_1 = arith.constant 0 : i32
    %c0_i32_2 = arith.constant 0 : i32
    return %0, %c0_i32_0, %c0_i32_1 : i32, i32, i32
  }
}

</mosaic_0001>

<llo_original>
// kernel: tpu_custom_call.1
$region0: #{tpu_custom_call.1}
  #allocation0 [shape = 'u32[]', space=smem, size = 0x4, offset = 0x4, fixed_abs, tag = 'smem constant byte address 0x4 - core index']
  #allocation1 [shape = 'u32[72,128]{1,0:T(1,128)}', space=vmem, size = 0x9000, scoped, tag = 'internal scratch']
  #allocation2 [shape = 'f32[8,128]{1,0:T(8,128)}', space=vmem, size = 0x1000, scoped, tag = 'scratch operand']
  #allocation3 [shape = 'f32[8,128]{1,0:T(8,128)}', space=vmem, size = 0x1000, scoped, tag = 'scratch operand']
  %s0 = inlined_call_operand.hbm [shape: f32[8,8,384], index: 0, kind: input, shape index: {}]
  %s1 = inlined_call_operand.hbm [shape: f32[8,8,384], index: 1, kind: input, shape index: {}]
  %s2 = inlined_call_operand.hbm [shape: f32[128,384], index: 2, kind: input, shape index: {}]
  %s3 = inlined_call_operand.hbm [shape: f32[128,384], index: 3, kind: input, shape index: {}]
  %s4 = inlined_call_operand.vmem [shape: f32[1,128], index: 4, kind: input, shape index: {}]
  %s5 = inlined_call_operand.vmem [shape: f32[1,128], index: 5, kind: input, shape index: {}]
  %s6 = inlined_call_operand.vmem [shape: s32[8,1], index: 6, kind: input, shape index: {}]
  %s7 = inlined_call_operand.hbm [shape: f32[8,8,128], index: 7, kind: output, shape index: {0}]
  %s8 = inlined_call_operand.hbm [shape: f32[8,8,128], index: 8, kind: output, shape index: {1}]
  %9 = xla_tuple %s7, %s8
  %s10 = sld [smem:[#allocation0]]
  $region73: #{tpu_custom_call.1} parent=0
    _
  %s12 = ssub.s32 1, %s10
  %s13 = scalar_select 0, %s12, %s10
  $region1: #{tpu_custom_call.1} parent=0
    #allocation4 [shape = 'u8[98304]{0}', space=vmem, size = 0x18000, scoped, tag = 'input window, operand 0, single buffered']
    #allocation5 [shape = 's32[1]{0}', space=sflag, size = 0x4, scoped, tag = 'scoped memory for tpu_custom_call.1']
    #allocation6 [shape = 's32[1]{0}', space=sflag, size = 0x4, scoped, tag = 'scoped memory for tpu_custom_call.1']
    #allocation7 [shape = 'u8[98304]{0}', space=vmem, size = 0x18000, scoped, tag = 'input window, operand 1, single buffered']
    #allocation8 [shape = 's32[1]{0}', space=sflag, size = 0x4, scoped, tag = 'scoped memory for tpu_custom_call.1']
    #allocation9 [shape = 'u8[196608]{0}', space=vmem, size = 0x30000, scoped, tag = 'input window, operand 2, single buffered']
    #allocation10 [shape = 'u8[196608]{0}', space=vmem, size = 0x30000, scoped, tag = 'input window, operand 3, single buffered']
    #allocation11 [shape = 's32[1]{0}', space=sflag, size = 0x4, scoped, tag = 'scoped memory for tpu_custom_call.1']
    #allocation12 [shape = 'u8[32768]{0}', space=vmem, size = 0x8000, scoped, tag = 'output window, operand 0, single buffered']
    #allocation13 [shape = 'u8[32768]{0}', space=vmem, size = 0x8000, scoped, tag = 'output window, operand 1, single buffered']
    #allocation14 [shape = 's32[1]{0}', space=sflag, size = 0x4, scoped, tag = 'scoped memory for tpu_custom_call.1']
    %14 = vsyncpa [#allocation5], 0
    %15 = vsyncpa [#allocation8], 0
    %16 = vsyncpa [#allocation11], 0
    %17 = vsyncpa [#allocation6], 0
    %18 = vsyncpa [#allocation14], 0
    // Predicated region
    $region2: #{tpu_custom_call.1} parent=1 // pred_check
      _
    $region3: #{tpu_custom_call.1} parent=1 // pred_check_branch
      %20 = sbr.rel (0) target = $region5
    $region4: #{tpu_custom_call.1} parent=1 // pred_region
      %22 = vsyncadd [#allocation5], 0
      %s23 = sshll.u32 %s0, 4
      %s24 = int_to_ptr.hbm [resolvable:$true] %s23
      %s25 = sshll.u32 [#allocation4], 4
      %s26 = int_to_ptr.vmem [resolvable:$true] %s25
      %31 = dma.hbm_to_vmem [thread:$0]  %s24, 3072, %s26, [#allocation5], 384, 384, 24
    $region5: #{tpu_custom_call.1} parent=1 // pred_fallthru
      _
    // Predicated region
    $region6: #{tpu_custom_call.1} parent=1 // pred_check
      _
    $region7: #{tpu_custom_call.1} parent=1 // pred_check_branch
      %33 = sbr.rel (0) target = $region9
    $region8: #{tpu_custom_call.1} parent=1 // pred_region
      %35 = vsyncadd [#allocation8], 0
      %s36 = sshll.u32 %s1, 4
      %s37 = int_to_ptr.hbm [resolvable:$true] %s36
      %s38 = sshll.u32 [#allocation7], 4
      %s39 = int_to_ptr.vmem [resolvable:$true] %s38
      %44 = dma.hbm_to_vmem [thread:$0]  %s37, 3072, %s39, [#allocation8], 384, 384, 24
    $region9: #{tpu_custom_call.1} parent=1 // pred_fallthru
      _
    // Predicated region
    $region10: #{tpu_custom_call.1} parent=1 // pred_check
      _
    $region11: #{tpu_custom_call.1} parent=1 // pred_check_branch
      %46 = sbr.rel (0) target = $region13
    $region12: #{tpu_custom_call.1} parent=1 // pred_region
      %48 = vsyncadd [#allocation8], 0
      %s49 = sshll.u32 %s2, 4
      %s50 = int_to_ptr.hbm [resolvable:$true] %s49
      %s51 = sshll.u32 [#allocation9], 4
      %s52 = int_to_ptr.vmem [resolvable:$true] %s51
      %57 = dma.hbm_to_vmem [thread:$0]  %s50, 6144, %s52, [#allocation8], 384, 384, 24
    $region13: #{tpu_custom_call.1} parent=1 // pred_fallthru
      _
    // Predicated region
    $region14: #{tpu_custom_call.1} parent=1 // pred_check
      _
    $region15: #{tpu_custom_call.1} parent=1 // pred_check_branch
      %59 = sbr.rel (0) target = $region17
    $region16: #{tpu_custom_call.1} parent=1 // pred_region
      %61 = vsyncadd [#allocation11], 0
      %s62 = sshll.u32 %s3, 4
      %s63 = int_to_ptr.hbm [resolvable:$true] %s62
      %s64 = sshll.u32 [#allocation10], 4
      %s65 = int_to_ptr.vmem [resolvable:$true] %s64
      %70 = dma.hbm_to_vmem [thread:$0]  %s63, 6144, %s65, [#allocation11], 384, 384, 24
    $region17: #{tpu_custom_call.1} parent=1 // pred_fallthru
      _
    // Predicated region
    $region18: #{tpu_custom_call.1} parent=1 // pred_check
      _
    $region19: #{tpu_custom_call.1} parent=1 // pred_check_branch
      %72 = sbr.rel (0) target = $region21
    $region20: #{tpu_custom_call.1} parent=1 // pred_region
      _
    $region21: #{tpu_custom_call.1} parent=1 // pred_fallthru
      _
    // Predicated region
    $region22: #{tpu_custom_call.1} parent=1 // pred_check
      _
    $region23: #{tpu_custom_call.1} parent=1 // pred_check_branch
      %74 = sbr.rel (0) target = $region25
    $region24: #{tpu_custom_call.1} parent=1 // pred_region
      _
    $region25: #{tpu_custom_call.1} parent=1 // pred_fallthru
      _
    // Predicated region
    $region26: #{tpu_custom_call.1} parent=1 // pred_check
      _
    $region27: #{tpu_custom_call.1} parent=1 // pred_check_branch
      %76 = sbr.rel (0) target = $region29
    $region28: #{tpu_custom_call.1} parent=1 // pred_region
      _
    $region29: #{tpu_custom_call.1} parent=1 // pred_fallthru
      _
    // Predicated region
    $region30: #{tpu_custom_call.1} parent=1 // pred_check
      _
    $region31: #{tpu_custom_call.1} parent=1 // pred_check_branch
      %78 = sbr.rel (0) target = $region33
    $region32: #{tpu_custom_call.1} parent=1 // pred_region
      %80 = dma.done [#allocation5], 3072
    $region33: #{tpu_custom_call.1} parent=1 // pred_fallthru
      _
    // Predicated region
    $region34: #{tpu_custom_call.1} parent=1 // pred_check
      _
    $region35: #{tpu_custom_call.1} parent=1 // pred_check_branch
      %82 = sbr.rel (0) target = $region37
    $region36: #{tpu_custom_call.1} parent=1 // pred_region
      %84 = dma.done [#allocation8], 3072
    $region37: #{tpu_custom_call.1} parent=1 // pred_fallthru
      _
    // Predicated region
    $region38: #{tpu_custom_call.1} parent=1 // pred_check
      _
    $region39: #{tpu_custom_call.1} parent=1 // pred_check_branch
      %86 = sbr.rel (0) target = $region41
    $region40: #{tpu_custom_call.1} parent=1 // pred_region
      %88 = dma.done [#allocation8], 6144
    $region41: #{tpu_custom_call.1} parent=1 // pred_fallthru
      _
    // Predicated region
    $region42: #{tpu_custom_call.1} parent=1 // pred_check
      _
    $region43: #{tpu_custom_call.1} parent=1 // pred_check_branch
      %90 = sbr.rel (0) target = $region45
    $region44: #{tpu_custom_call.1} parent=1 // pred_region
      %92 = dma.done [#allocation11], 6144
    $region45: #{tpu_custom_call.1} parent=1 // pred_fallthru
      _
    %s93 = ssub.s32 0, 0
    %s94 = smul.u32 8, %s93
    %p95 = scmp.eq.s32.totalorder 0, 0
    // Predicated region
    $region46: #{tpu_custom_call.1} parent=1 // pred_check
      %p96 = pneg %p95
    $region47: #{tpu_custom_call.1} parent=1 // pred_check_branch
      %98 = sbr.rel (%p96) target = $region49
    $region48: #{tpu_custom_call.1} parent=1 // pred_region
      %99 = vst [vmem:[#allocation2] sm:$0xff] 0.0
      %100 = vst [vmem:[#allocation3] sm:$0xff] 0.0
    $region49: #{tpu_custom_call.1} parent=1 // pred_fallthru
      _
    %v101 = vld [vmem:[%s6] sm:$0xff]
    %v102 = vsub.s32 8, %v101
    %v103 = vld [vmem:[%s4] sm:$0x1]
    %v105 = vperm.slane %v103, 0
    %v107 = vld [vmem:[%s5] sm:$0x1]
    %v109 = vperm.slane %v107, 0
    %s111 = smul.u32 0, 8
    %v112 = vld [vmem:[#allocation2] sm:$0xff]
    %v113 = vld [vmem:[#allocation3] sm:$0xff]
    loop: start=0, step=1, limit=2
    $region50: #{tpu_custom_call.1} parent=1 // loop_pre_header
      _
    $region51: #{tpu_custom_call.1} parent=1 // loop_header
      %s115 = sphi 0, %s119
      %p116 = scmp.ge.s32.totalorder %s115, 2
      %v120 = vphi %v112, %v1240
      %v121 = vphi %v113, %v1270
    $region52: #{tpu_custom_call.1} parent=1 // loop_header_branch
      %118 = sbr.rel (%p116) target = $region56
    $region53: #{tpu_custom_call.1} parent=1 // loop_body
      %s122 = smul.u32 %s115, 4
      %s123 = sadd.s32 %s111, %s122
      %v124 = vstv %s123
      %vm125 = vcmp.lt.s32.totalorder %v124, %v101
      %vm126 = vcmp.ge.s32.totalorder %v124, %v102
      %v127 = vld [vmem:[#allocation9] sm:$0xff]
      %v128 = vld [vmem:[#allocation9 + $0x8] sm:$0xff]
      %v129 = vld [vmem:[#allocation9 + $0x10] sm:$0xff]
      %v130 = vld [vmem:[#allocation9 + $0x18] sm:$0xff]
      %v131 = vld [vmem:[#allocation9 + $0x20] sm:$0xff]
      %v132 = vld [vmem:[#allocation9 + $0x28] sm:$0xff]
      %v133 = vld [vmem:[#allocation9 + $0x30] sm:$0xff]
      %v134 = vld [vmem:[#allocation9 + $0x38] sm:$0xff]
      %v135 = vld [vmem:[#allocation9 + $0x40] sm:$0xff]
      %v136 = vld [vmem:[#allocation9 + $0x48] sm:$0xff]
      %v137 = vld [vmem:[#allocation9 + $0x50] sm:$0xff]
      %v138 = vld [vmem:[#allocation9 + $0x58] sm:$0xff]
      %v139 = vld [vmem:[#allocation9 + $0x60] sm:$0xff]
      %v140 = vld [vmem:[#allocation9 + $0x68] sm:$0xff]
      %v141 = vld [vmem:[#allocation9 + $0x70] sm:$0xff]
      %v142 = vld [vmem:[#allocation9 + $0x78] sm:$0xff]
      %v143 = vld [vmem:[#allocation9 + $0x80] sm:$0xff]
      %v144 = vld [vmem:[#allocation9 + $0x88] sm:$0xff]
      %v145 = vld [vmem:[#allocation9 + $0x90] sm:$0xff]
      %v146 = vld [vmem:[#allocation9 + $0x98] sm:$0xff]
      %v147 = vld [vmem:[#allocation9 + $0xa0] sm:$0xff]
      %v148 = vld [vmem:[#allocation9 + $0xa8] sm:$0xff]
      %v149 = vld [vmem:[#allocation9 + $0xb0] sm:$0xff]
      %v150 = vld [vmem:[#allocation9 + $0xb8] sm:$0xff]
      %v151 = vld [vmem:[#allocation9 + $0xc0] sm:$0xff]
      %v152 = vld [vmem:[#allocation9 + $0xc8] sm:$0xff]
      %v153 = vld [vmem:[#allocation9 + $0xd0] sm:$0xff]
      %v154 = vld [vmem:[#allocation9 + $0xd8] sm:$0xff]
      %v155 = vld [vmem:[#allocation9 + $0xe0] sm:$0xff]
      %v156 = vld [vmem:[#allocation9 + $0xe8] sm:$0xff]
      %v157 = vld [vmem:[#allocation9 + $0xf0] sm:$0xff]
      %v158 = vld [vmem:[#allocation9 + $0xf8] sm:$0xff]
      %v159 = vld [vmem:[#allocation9 + $0x100] sm:$0xff]
      %v160 = vld [vmem:[#allocation9 + $0x108] sm:$0xff]
      %v161 = vld [vmem:[#allocation9 + $0x110] sm:$0xff]
      %v162 = vld [vmem:[#allocation9 + $0x118] sm:$0xff]
      %v163 = vld [vmem:[#allocation9 + $0x120] sm:$0xff]
      %v164 = vld [vmem:[#allocation9 + $0x128] sm:$0xff]
      %v165 = vld [vmem:[#allocation9 + $0x130] sm:$0xff]
      %v166 = vld [vmem:[#allocation9 + $0x138] sm:$0xff]
      %v167 = vld [vmem:[#allocation9 + $0x140] sm:$0xff]
      %v168 = vld [vmem:[#allocation9 + $0x148] sm:$0xff]
      %v169 = vld [vmem:[#allocation9 + $0x150] sm:$0xff]
      %v170 = vld [vmem:[#allocation9 + $0x158] sm:$0xff]
      %v171 = vld [vmem:[#allocation9 + $0x160] sm:$0xff]
      %v172 = vld [vmem:[#allocation9 + $0x168] sm:$0xff]
      %v173 = vld [vmem:[#allocation9 + $0x170] sm:$0xff]
      %v174 = vld [vmem:[#allocation9 + $0x178] sm:$0xff]
      %175 = vmatpush.msra.mxu0 %v172
      %176 = vmatpush.msra.mxu0 %v169
      %177 = vmatpush.msra.mxu0 %v166
      %178 = vmatpush.msra.mxu0 %v163
      %179 = vmatpush.msra.mxu0 %v160
      %180 = vmatpush.msra.mxu0 %v157
      %181 = vmatpush.msra.mxu0 %v154
      %182 = vmatpush.msra.mxu0 %v151
      %183 = vmatpush.msra.mxu0 %v148
      %184 = vmatpush.msra.mxu0 %v145
      %185 = vmatpush.msra.mxu0 %v142
      %186 = vmatpush.msra.mxu0 %v139
      %187 = vmatpush.msra.mxu0 %v136
      %188 = vmatpush.msra.mxu0 %v133
      %189 = vmatpush.msra.mxu0 %v130
      %190 = vmatpush.msra.mxu0 %v127
      %191 = vmatmul.f32.gmra.mxu0 %v120
      %v192 = vpop.f32.mrf.mxu0
      %v193 = vadd.f32 0.0, %v192
      %194 = vdwg.mxu0
      %195 = vmatpush.msra.mxu0 %v173
      %196 = vmatpush.msra.mxu0 %v170
      %197 = vmatpush.msra.mxu0 %v167
      %198 = vmatpush.msra.mxu0 %v164
      %199 = vmatpush.msra.mxu0 %v161
      %200 = vmatpush.msra.mxu0 %v158
      %201 = vmatpush.msra.mxu0 %v155
      %202 = vmatpush.msra.mxu0 %v152
      %203 = vmatpush.msra.mxu0 %v149
      %204 = vmatpush.msra.mxu0 %v146
      %205 = vmatpush.msra.mxu0 %v143
      %206 = vmatpush.msra.mxu0 %v140
      %207 = vmatpush.msra.mxu0 %v137
      %208 = vmatpush.msra.mxu0 %v134
      %209 = vmatpush.msra.mxu0 %v131
      %210 = vmatpush.msra.mxu0 %v128
      %211 = vmatmul.f32.gmra.mxu0 %v120
      %v212 = vpop.f32.mrf.mxu0
      %v213 = vadd.f32 0.0, %v212
      %214 = vdwg.mxu0
      %215 = vmatpush.msra.mxu0 %v174
      %216 = vmatpush.msra.mxu0 %v171
      %217 = vmatpush.msra.mxu0 %v168
      %218 = vmatpush.msra.mxu0 %v165
      %219 = vmatpush.msra.mxu0 %v162
      %220 = vmatpush.msra.mxu0 %v159
      %221 = vmatpush.msra.mxu0 %v156
      %222 = vmatpush.msra.mxu0 %v153
      %223 = vmatpush.msra.mxu0 %v150
      %224 = vmatpush.msra.mxu0 %v147
      %225 = vmatpush.msra.mxu0 %v144
      %226 = vmatpush.msra.mxu0 %v141
      %227 = vmatpush.msra.mxu0 %v138
      %228 = vmatpush.msra.mxu0 %v135
      %229 = vmatpush.msra.mxu0 %v132
      %230 = vmatpush.msra.mxu0 %v129
      %231 = vmatmul.f32.gmra.mxu0 %v120
      %v232 = vpop.f32.mrf.mxu0
      %v233 = vadd.f32 0.0, %v232
      %234 = vdwg.mxu0
      %v235 = vld [vmem:[#allocation10] sm:$0xff]
      %v236 = vld [vmem:[#allocation10 + $0x8] sm:$0xff]
      %v237 = vld [vmem:[#allocation10 + $0x10] sm:$0xff]
      %v238 = vld [vmem:[#allocation10 + $0x18] sm:$0xff]
      %v239 = vld [vmem:[#allocation10 + $0x20] sm:$0xff]
      %v240 = vld [vmem:[#allocation10 + $0x28] sm:$0xff]
      %v241 = vld [vmem:[#allocation10 + $0x30] sm:$0xff]
      %v242 = vld [vmem:[#allocation10 + $0x38] sm:$0xff]
      %v243 = vld [vmem:[#allocation10 + $0x40] sm:$0xff]
      %v244 = vld [vmem:[#allocation10 + $0x48] sm:$0xff]
      %v245 = vld [vmem:[#allocation10 + $0x50] sm:$0xff]
      %v246 = vld [vmem:[#allocation10 + $0x58] sm:$0xff]
      %v247 = vld [vmem:[#allocation10 + $0x60] sm:$0xff]
      %v248 = vld [vmem:[#allocation10 + $0x68] sm:$0xff]
      %v249 = vld [vmem:[#allocation10 + $0x70] sm:$0xff]
      %v250 = vld [vmem:[#allocation10 + $0x78] sm:$0xff]
      %v251 = vld [vmem:[#allocation10 + $0x80] sm:$0xff]
      %v252 = vld [vmem:[#allocation10 + $0x88] sm:$0xff]
      %v253 = vld [vmem:[#allocation10 + $0x90] sm:$0xff]
      %v254 = vld [vmem:[#allocation10 + $0x98] sm:$0xff]
      %v255 = vld [vmem:[#allocation10 + $0xa0] sm:$0xff]
      %v256 = vld [vmem:[#allocation10 + $0xa8] sm:$0xff]
      %v257 = vld [vmem:[#allocation10 + $0xb0] sm:$0xff]
      %v258 = vld [vmem:[#allocation10 + $0xb8] sm:$0xff]
      %v259 = vld [vmem:[#allocation10 + $0xc0] sm:$0xff]
      %v260 = vld [vmem:[#allocation10 + $0xc8] sm:$0xff]
      %v261 = vld [vmem:[#allocation10 + $0xd0] sm:$0xff]
      %v262 = vld [vmem:[#allocation10 + $0xd8] sm:$0xff]
      %v263 = vld [vmem:[#allocation10 + $0xe0] sm:$0xff]
      %v264 = vld [vmem:[#allocation10 + $0xe8] sm:$0xff]
      %v265 = vld [vmem:[#allocation10 + $0xf0] sm:$0xff]
      %v266 = vld [vmem:[#allocation10 + $0xf8] sm:$0xff]
      %v267 = vld [vmem:[#allocation10 + $0x100] sm:$0xff]
      %v268 = vld [vmem:[#allocation10 + $0x108] sm:$0xff]
      %v269 = vld [vmem:[#allocation10 + $0x110] sm:$0xff]
      %v270 = vld [vmem:[#allocation10 + $0x118] sm:$0xff]
      %v271 = vld [vmem:[#allocation10 + $0x120] sm:$0xff]
      %v272 = vld [vmem:[#allocation10 + $0x128] sm:$0xff]
      %v273 = vld [vmem:[#allocation10 + $0x130] sm:$0xff]
      %v274 = vld [vmem:[#allocation10 + $0x138] sm:$0xff]
      %v275 = vld [vmem:[#allocation10 + $0x140] sm:$0xff]
      %v276 = vld [vmem:[#allocation10 + $0x148] sm:$0xff]
      %v277 = vld [vmem:[#allocation10 + $0x150] sm:$0xff]
      %v278 = vld [vmem:[#allocation10 + $0x158] sm:$0xff]
      %v279 = vld [vmem:[#allocation10 + $0x160] sm:$0xff]
      %v280 = vld [vmem:[#allocation10 + $0x168] sm:$0xff]
      %v281 = vld [vmem:[#allocation10 + $0x170] sm:$0xff]
      %v282 = vld [vmem:[#allocation10 + $0x178] sm:$0xff]
      %283 = vmatpush.msra.mxu0 %v280
      %284 = vmatpush.msra.mxu0 %v277
      %285 = vmatpush.msra.mxu0 %v274
      %286 = vmatpush.msra.mxu0 %v271
      %287 = vmatpush.msra.mxu0 %v268
      %288 = vmatpush.msra.mxu0 %v265
      %289 = vmatpush.msra.mxu0 %v262
      %290 = vmatpush.msra.mxu0 %v259
      %291 = vmatpush.msra.mxu0 %v256
      %292 = vmatpush.msra.mxu0 %v253
      %293 = vmatpush.msra.mxu0 %v250
      %294 = vmatpush.msra.mxu0 %v247
      %295 = vmatpush.msra.mxu0 %v244
      %296 = vmatpush.msra.mxu0 %v241
      %297 = vmatpush.msra.mxu0 %v238
      %298 = vmatpush.msra.mxu0 %v235
      %299 = vmatmul.f32.gmra.mxu0 %v121
      %v300 = vpop.f32.mrf.mxu0
      %v301 = vadd.f32 0.0, %v300
      %302 = vdwg.mxu0
      %303 = vmatpush.msra.mxu0 %v281
      %304 = vmatpush.msra.mxu0 %v278
      %305 = vmatpush.msra.mxu0 %v275
      %306 = vmatpush.msra.mxu0 %v272
      %307 = vmatpush.msra.mxu0 %v269
      %308 = vmatpush.msra.mxu0 %v266
      %309 = vmatpush.msra.mxu0 %v263
      %310 = vmatpush.msra.mxu0 %v260
      %311 = vmatpush.msra.mxu0 %v257
      %312 = vmatpush.msra.mxu0 %v254
      %313 = vmatpush.msra.mxu0 %v251
      %314 = vmatpush.msra.mxu0 %v248
      %315 = vmatpush.msra.mxu0 %v245
      %316 = vmatpush.msra.mxu0 %v242
      %317 = vmatpush.msra.mxu0 %v239
      %318 = vmatpush.msra.mxu0 %v236
      %319 = vmatmul.f32.gmra.mxu0 %v121
      %v320 = vpop.f32.mrf.mxu0
      %v321 = vadd.f32 0.0, %v320
      %322 = vdwg.mxu0
      %323 = vmatpush.msra.mxu0 %v282
      %324 = vmatpush.msra.mxu0 %v279
      %325 = vmatpush.msra.mxu0 %v276
      %326 = vmatpush.msra.mxu0 %v273
      %327 = vmatpush.msra.mxu0 %v270
      %328 = vmatpush.msra.mxu0 %v267
      %329 = vmatpush.msra.mxu0 %v264
      %330 = vmatpush.msra.mxu0 %v261
      %331 = vmatpush.msra.mxu0 %v258
      %332 = vmatpush.msra.mxu0 %v255
      %333 = vmatpush.msra.mxu0 %v252
      %334 = vmatpush.msra.mxu0 %v249
      %335 = vmatpush.msra.mxu0 %v246
      %336 = vmatpush.msra.mxu0 %v243
      %337 = vmatpush.msra.mxu0 %v240
      %338 = vmatpush.msra.mxu0 %v237
      %339 = vmatmul.f32.gmra.mxu0 %v121
      %v340 = vpop.f32.mrf.mxu0
      %v341 = vadd.f32 0.0, %v340
      %342 = vdwg.mxu0
      %s343 = smul.u32 %s122, 3
      %s344 = smul.addr %s343, 8
      %s345 = scalar_lea.vmem [#allocation4], %s344
      %v346 = vld [vmem:[%s345] sm:$0xff]
      %v347 = vld [vmem:[%s345 + $0x8] sm:$0xff]
      %v348 = vld [vmem:[%s345 + $0x10] sm:$0xff]
      %v349 = vadd.f32 %v346, %v193
      %v350 = vmul.f32 %v349, 0.5
      %v351 = vtanh.pop %v350
      %v352 = vadd.f32 %v351, 1.0
      %v353 = vmul.f32 %v352, 0.5
      %v354 = vadd.f32 %v347, %v213
      %v355 = vmul.f32 %v354, 0.5
      %v356 = vtanh.pop %v355
      %v357 = vadd.f32 %v356, 1.0
      %v358 = vmul.f32 %v357, 0.5
      %v359 = vadd.f32 %v233, %v105
      %v360 = vmul.f32 %v353, %v359
      %v361 = vadd.f32 %v348, %v360
      %v362 = vtanh.pop %v361
      %v363 = vsub.f32 1.0, %v358
      %v364 = vmul.f32 %v363, %v362
      %v365 = vmul.f32 %v358, %v120
      %v366 = vadd.f32 %v364, %v365
      %v367 = vsel %vm125, 1, 0
      %368 = vset.pattern.permute.xlu0 0
      %369 = vperm.xlu0 %368, %v367
      %v370 = vpop.permute.xlu0 %369
      %vm371 = vcmp.eq.s32.totalorder %v370, 1
      %v372 = vsel %vm371, %v366, 0.0
      %v373 = vsel %vm371, %v366, %v120
      %s374 = smul.addr %s343, 8
      %s375 = scalar_lea.vmem [#allocation7], %s374
      %v376 = vld [vmem:[%s375] sm:$0xff]
      %v377 = vld [vmem:[%s375 + $0x8] sm:$0xff]
      %v378 = vld [vmem:[%s375 + $0x10] sm:$0xff]
      %v379 = vadd.f32 %v376, %v301
      %v380 = vmul.f32 %v379, 0.5
      %v381 = vtanh.pop %v380
      %v382 = vadd.f32 %v381, 1.0
      %v383 = vmul.f32 %v382, 0.5
      %v384 = vadd.f32 %v377, %v321
      %v385 = vmul.f32 %v384, 0.5
      %v386 = vtanh.pop %v385
      %v387 = vadd.f32 %v386, 1.0
      %v388 = vmul.f32 %v387, 0.5
      %v389 = vadd.f32 %v341, %v109
      %v390 = vmul.f32 %v383, %v389
      %v391 = vadd.f32 %v378, %v390
      %v392 = vtanh.pop %v391
      %v393 = vsub.f32 1.0, %v388
      %v394 = vmul.f32 %v393, %v392
      %v395 = vmul.f32 %v388, %v121
      %v396 = vadd.f32 %v394, %v395
      %v397 = vsel %vm126, 1, 0
      %398 = vset.pattern.permute.xlu0 0
      %399 = vperm.xlu0 %398, %v397
      %v400 = vpop.permute.xlu0 %399
      %vm401 = vcmp.eq.s32.totalorder %v400, 1
      %v402 = vsel %vm401, %v396, 0.0
      %v403 = vsel %vm401, %v396, %v121
      %s404 = smul.u32 %s122, 8
      %s405 = scalar_lea.vmem [#allocation12], %s404
      %406 = vst [vmem:[%s405] sm:$0xff] %v372
      %s407 = ssub.s32 7, %s122
      %s408 = smul.u32 %s407, 8
      %s409 = scalar_lea.vmem [#allocation13], %s408
      %410 = vst [vmem:[%s409] sm:$0xff] %v402
      %s411 = sadd.s32 %s122, 1
      %s412 = sadd.s32 %s111, %s411
      %v413 = vstv %s412
      %vm414 = vcmp.lt.s32.totalorder %v413, %v101
      %vm415 = vcmp.ge.s32.totalorder %v413, %v102
      %v416 = vld [vmem:[#allocation9] sm:$0xff]
      %v417 = vld [vmem:[#allocation9 + $0x8] sm:$0xff]
      %v418 = vld [vmem:[#allocation9 + $0x10] sm:$0xff]
      %v419 = vld [vmem:[#allocation9 + $0x18] sm:$0xff]
      %v420 = vld [vmem:[#allocation9 + $0x20] sm:$0xff]
      %v421 = vld [vmem:[#allocation9 + $0x28] sm:$0xff]
      %v422 = vld [vmem:[#allocation9 + $0x30] sm:$0xff]
      %v423 = vld [vmem:[#allocation9 + $0x38] sm:$0xff]
      %v424 = vld [vmem:[#allocation9 + $0x40] sm:$0xff]
      %v425 = vld [vmem:[#allocation9 + $0x48] sm:$0xff]
      %v426 = vld [vmem:[#allocation9 + $0x50] sm:$0xff]
      %v427 = vld [vmem:[#allocation9 + $0x58] sm:$0xff]
      %v428 = vld [vmem:[#allocation9 + $0x60] sm:$0xff]
      %v429 = vld [vmem:[#allocation9 + $0x68] sm:$0xff]
      %v430 = vld [vmem:[#allocation9 + $0x70] sm:$0xff]
      %v431 = vld [vmem:[#allocation9 + $0x78] sm:$0xff]
      %v432 = vld [vmem:[#allocation9 + $0x80] sm:$0xff]
      %v433 = vld [vmem:[#allocation9 + $0x88] sm:$0xff]
      %v434 = vld [vmem:[#allocation9 + $0x90] sm:$0xff]
      %v435 = vld [vmem:[#allocation9 + $0x98] sm:$0xff]
      %v436 = vld [vmem:[#allocation9 + $0xa0] sm:$0xff]
      %v437 = vld [vmem:[#allocation9 + $0xa8] sm:$0xff]
      %v438 = vld [vmem:[#allocation9 + $0xb0] sm:$0xff]
      %v439 = vld [vmem:[#allocation9 + $0xb8] sm:$0xff]
      %v440 = vld [vmem:[#allocation9 + $0xc0] sm:$0xff]
      %v441 = vld [vmem:[#allocation9 + $0xc8] sm:$0xff]
      %v442 = vld [vmem:[#allocation9 + $0xd0] sm:$0xff]
      %v443 = vld [vmem:[#allocation9 + $0xd8] sm:$0xff]
      %v444 = vld [vmem:[#allocation9 + $0xe0] sm:$0xff]
      %v445 = vld [vmem:[#allocation9 + $0xe8] sm:$0xff]
      %v446 = vld [vmem:[#allocation9 + $0xf0] sm:$0xff]
      %v447 = vld [vmem:[#allocation9 + $0xf8] sm:$0xff]
      %v448 = vld [vmem:[#allocation9 + $0x100] sm:$0xff]
      %v449 = vld [vmem:[#allocation9 + $0x108] sm:$0xff]
      %v450 = vld [vmem:[#allocation9 + $0x110] sm:$0xff]
      %v451 = vld [vmem:[#allocation9 + $0x118] sm:$0xff]
      %v452 = vld [vmem:[#allocation9 + $0x120] sm:$0xff]
      %v453 = vld [vmem:[#allocation9 + $0x128] sm:$0xff]
      %v454 = vld [vmem:[#allocation9 + $0x130] sm:$0xff]
      %v455 = vld [vmem:[#allocation9 + $0x138] sm:$0xff]
      %v456 = vld [vmem:[#allocation9 + $0x140] sm:$0xff]
      %v457 = vld [vmem:[#allocation9 + $0x148] sm:$0xff]
      %v458 = vld [vmem:[#allocation9 + $0x150] sm:$0xff]
      %v459 = vld [vmem:[#allocation9 + $0x158] sm:$0xff]
      %v460 = vld [vmem:[#allocation9 + $0x160] sm:$0xff]
      %v461 = vld [vmem:[#allocation9 + $0x168] sm:$0xff]
      %v462 = vld [vmem:[#allocation9 + $0x170] sm:$0xff]
      %v463 = vld [vmem:[#allocation9 + $0x178] sm:$0xff]
      %464 = vmatpush.msra.mxu0 %v461
      %465 = vmatpush.msra.mxu0 %v458
      %466 = vmatpush.msra.mxu0 %v455
      %467 = vmatpush.msra.mxu0 %v452
      %468 = vmatpush.msra.mxu0 %v449
      %469 = vmatpush.msra.mxu0 %v446
      %470 = vmatpush.msra.mxu0 %v443
      %471 = vmatpush.msra.mxu0 %v440
      %472 = vmatpush.msra.mxu0 %v437
      %473 = vmatpush.msra.mxu0 %v434
      %474 = vmatpush.msra.mxu0 %v431
      %475 = vmatpush.msra.mxu0 %v428
      %476 = vmatpush.msra.mxu0 %v425
      %477 = vmatpush.msra.mxu0 %v422
      %478 = vmatpush.msra.mxu0 %v419
      %479 = vmatpush.msra.mxu0 %v416
      %480 = vmatmul.f32.gmra.mxu0 %v373
      %v481 = vpop.f32.mrf.mxu0
      %v482 = vadd.f32 0.0, %v481
      %483 = vdwg.mxu0
      %484 = vmatpush.msra.mxu0 %v462
      %485 = vmatpush.msra.mxu0 %v459
      %486 = vmatpush.msra.mxu0 %v456
      %487 = vmatpush.msra.mxu0 %v453
      %488 = vmatpush.msra.mxu0 %v450
      %489 = vmatpush.msra.mxu0 %v447
      %490 = vmatpush.msra.mxu0 %v444
      %491 = vmatpush.msra.mxu0 %v441
      %492 = vmatpush.msra.mxu0 %v438
      %493 = vmatpush.msra.mxu0 %v435
      %494 = vmatpush.msra.mxu0 %v432
      %495 = vmatpush.msra.mxu0 %v429
      %496 = vmatpush.msra.mxu0 %v426
      %497 = vmatpush.msra.mxu0 %v423
      %498 = vmatpush.msra.mxu0 %v420
      %499 = vmatpush.msra.mxu0 %v417
      %500 = vmatmul.f32.gmra.mxu0 %v373
      %v501 = vpop.f32.mrf.mxu0
      %v502 = vadd.f32 0.0, %v501
      %503 = vdwg.mxu0
      %504 = vmatpush.msra.mxu0 %v463
      %505 = vmatpush.msra.mxu0 %v460
      %506 = vmatpush.msra.mxu0 %v457
      %507 = vmatpush.msra.mxu0 %v454
      %508 = vmatpush.msra.mxu0 %v451
      %509 = vmatpush.msra.mxu0 %v448
      %510 = vmatpush.msra.mxu0 %v445
      %511 = vmatpush.msra.mxu0 %v442
      %512 = vmatpush.msra.mxu0 %v439
      %513 = vmatpush.msra.mxu0 %v436
      %514 = vmatpush.msra.mxu0 %v433
      %515 = vmatpush.msra.mxu0 %v430
      %516 = vmatpush.msra.mxu0 %v427
      %517 = vmatpush.msra.mxu0 %v424
      %518 = vmatpush.msra.mxu0 %v421
      %519 = vmatpush.msra.mxu0 %v418
      %520 = vmatmul.f32.gmra.mxu0 %v373
      %v521 = vpop.f32.mrf.mxu0
      %v522 = vadd.f32 0.0, %v521
      %523 = vdwg.mxu0
      %v524 = vld [vmem:[#allocation10] sm:$0xff]
      %v525 = vld [vmem:[#allocation10 + $0x8] sm:$0xff]
      %v526 = vld [vmem:[#allocation10 + $0x10] sm:$0xff]
      %v527 = vld [vmem:[#allocation10 + $0x18] sm:$0xff]
      %v528 = vld [vmem:[#allocation10 + $0x20] sm:$0xff]
      %v529 = vld [vmem:[#allocation10 + $0x28] sm:$0xff]
      %v530 = vld [vmem:[#allocation10 + $0x30] sm:$0xff]
      %v531 = vld [vmem:[#allocation10 + $0x38] sm:$0xff]
      %v532 = vld [vmem:[#allocation10 + $0x40] sm:$0xff]
      %v533 = vld [vmem:[#allocation10 + $0x48] sm:$0xff]
      %v534 = vld [vmem:[#allocation10 + $0x50] sm:$0xff]
      %v535 = vld [vmem:[#allocation10 + $0x58] sm:$0xff]
      %v536 = vld [vmem:[#allocation10 + $0x60] sm:$0xff]
      %v537 = vld [vmem:[#allocation10 + $0x68] sm:$0xff]
      %v538 = vld [vmem:[#allocation10 + $0x70] sm:$0xff]
      %v539 = vld [vmem:[#allocation10 + $0x78] sm:$0xff]
      %v540 = vld [vmem:[#allocation10 + $0x80] sm:$0xff]
      %v541 = vld [vmem:[#allocation10 + $0x88] sm:$0xff]
      %v542 = vld [vmem:[#allocation10 + $0x90] sm:$0xff]
      %v543 = vld [vmem:[#allocation10 + $0x98] sm:$0xff]
      %v544 = vld [vmem:[#allocation10 + $0xa0] sm:$0xff]
      %v545 = vld [vmem:[#allocation10 + $0xa8] sm:$0xff]
      %v546 = vld [vmem:[#allocation10 + $0xb0] sm:$0xff]
      %v547 = vld [vmem:[#allocation10 + $0xb8] sm:$0xff]
      %v548 = vld [vmem:[#allocation10 + $0xc0] sm:$0xff]
      %v549 = vld [vmem:[#allocation10 + $0xc8] sm:$0xff]
      %v550 = vld [vmem:[#allocation10 + $0xd0] sm:$0xff]
      %v551 = vld [vmem:[#allocation10 + $0xd8] sm:$0xff]
      %v552 = vld [vmem:[#allocation10 + $0xe0] sm:$0xff]
      %v553 = vld [vmem:[#allocation10 + $0xe8] sm:$0xff]
      %v554 = vld [vmem:[#allocation10 + $0xf0] sm:$0xff]
      %v555 = vld [vmem:[#allocation10 + $0xf8] sm:$0xff]
      %v556 = vld [vmem:[#allocation10 + $0x100] sm:$0xff]
      %v557 = vld [vmem:[#allocation10 + $0x108] sm:$0xff]
      %v558 = vld [vmem:[#allocation10 + $0x110] sm:$0xff]
      %v559 = vld [vmem:[#allocation10 + $0x118] sm:$0xff]
      %v560 = vld [vmem:[#allocation10 + $0x120] sm:$0xff]
      %v561 = vld [vmem:[#allocation10 + $0x128] sm:$0xff]
      %v562 = vld [vmem:[#allocation10 + $0x130] sm:$0xff]
      %v563 = vld [vmem:[#allocation10 + $0x138] sm:$0xff]
      %v564 = vld [vmem:[#allocation10 + $0x140] sm:$0xff]
      %v565 = vld [vmem:[#allocation10 + $0x148] sm:$0xff]
      %v566 = vld [vmem:[#allocation10 + $0x150] sm:$0xff]
      %v567 = vld [vmem:[#allocation10 + $0x158] sm:$0xff]
      %v568 = vld [vmem:[#allocation10 + $0x160] sm:$0xff]
      %v569 = vld [vmem:[#allocation10 + $0x168] sm:$0xff]
      %v570 = vld [vmem:[#allocation10 + $0x170] sm:$0xff]
      %v571 = vld [vmem:[#allocation10 + $0x178] sm:$0xff]
      %572 = vmatpush.msra.mxu0 %v569
      %573 = vmatpush.msra.mxu0 %v566
      %574 = vmatpush.msra.mxu0 %v563
      %575 = vmatpush.msra.mxu0 %v560
      %576 = vmatpush.msra.mxu0 %v557
      %577 = vmatpush.msra.mxu0 %v554
      %578 = vmatpush.msra.mxu0 %v551
      %579 = vmatpush.msra.mxu0 %v548
      %580 = vmatpush.msra.mxu0 %v545
      %581 = vmatpush.msra.mxu0 %v542
      %582 = vmatpush.msra.mxu0 %v539
      %583 = vmatpush.msra.mxu0 %v536
      %584 = vmatpush.msra.mxu0 %v533
      %585 = vmatpush.msra.mxu0 %v530
      %586 = vmatpush.msra.mxu0 %v527
      %587 = vmatpush.msra.mxu0 %v524
      %588 = vmatmul.f32.gmra.mxu0 %v403
      %v589 = vpop.f32.mrf.mxu0
      %v590 = vadd.f32 0.0, %v589
      %591 = vdwg.mxu0
      %592 = vmatpush.msra.mxu0 %v570
      %593 = vmatpush.msra.mxu0 %v567
      %594 = vmatpush.msra.mxu0 %v564
      %595 = vmatpush.msra.mxu0 %v561
      %596 = vmatpush.msra.mxu0 %v558
      %597 = vmatpush.msra.mxu0 %v555
      %598 = vmatpush.msra.mxu0 %v552
      %599 = vmatpush.msra.mxu0 %v549
      %600 = vmatpush.msra.mxu0 %v546
      %601 = vmatpush.msra.mxu0 %v543
      %602 = vmatpush.msra.mxu0 %v540
      %603 = vmatpush.msra.mxu0 %v537
      %604 = vmatpush.msra.mxu0 %v534
      %605 = vmatpush.msra.mxu0 %v531
      %606 = vmatpush.msra.mxu0 %v528
      %607 = vmatpush.msra.mxu0 %v525
      %608 = vmatmul.f32.gmra.mxu0 %v403
      %v609 = vpop.f32.mrf.mxu0
      %v610 = vadd.f32 0.0, %v609
      %611 = vdwg.mxu0
      %612 = vmatpush.msra.mxu0 %v571
      %613 = vmatpush.msra.mxu0 %v568
      %614 = vmatpush.msra.mxu0 %v565
      %615 = vmatpush.msra.mxu0 %v562
      %616 = vmatpush.msra.mxu0 %v559
      %617 = vmatpush.msra.mxu0 %v556
      %618 = vmatpush.msra.mxu0 %v553
      %619 = vmatpush.msra.mxu0 %v550
      %620 = vmatpush.msra.mxu0 %v547
      %621 = vmatpush.msra.mxu0 %v544
      %622 = vmatpush.msra.mxu0 %v541
      %623 = vmatpush.msra.mxu0 %v538
      %624 = vmatpush.msra.mxu0 %v535
      %625 = vmatpush.msra.mxu0 %v532
      %626 = vmatpush.msra.mxu0 %v529
      %627 = vmatpush.msra.mxu0 %v526
      %628 = vmatmul.f32.gmra.mxu0 %v403
      %v629 = vpop.f32.mrf.mxu0
      %v630 = vadd.f32 0.0, %v629
      %631 = vdwg.mxu0
      %s632 = smul.u32 %s411, 3
      %s633 = smul.addr %s632, 8
      %s634 = scalar_lea.vmem [#allocation4], %s633
      %v635 = vld [vmem:[%s634] sm:$0xff]
      %v636 = vld [vmem:[%s634 + $0x8] sm:$0xff]
      %v637 = vld [vmem:[%s634 + $0x10] sm:$0xff]
      %v638 = vadd.f32 %v635, %v482
      %v639 = vmul.f32 %v638, 0.5
      %v640 = vtanh.pop %v639
      %v641 = vadd.f32 %v640, 1.0
      %v642 = vmul.f32 %v641, 0.5
      %v643 = vadd.f32 %v636, %v502
      %v644 = vmul.f32 %v643, 0.5
      %v645 = vtanh.pop %v644
      %v646 = vadd.f32 %v645, 1.0
      %v647 = vmul.f32 %v646, 0.5
      %v648 = vadd.f32 %v522, %v105
      %v649 = vmul.f32 %v642, %v648
      %v650 = vadd.f32 %v637, %v649
      %v651 = vtanh.pop %v650
      %v652 = vsub.f32 1.0, %v647
      %v653 = vmul.f32 %v652, %v651
      %v654 = vmul.f32 %v647, %v373
      %v655 = vadd.f32 %v653, %v654
      %v656 = vsel %vm414, 1, 0
      %657 = vset.pattern.permute.xlu0 0
      %658 = vperm.xlu0 %657, %v656
      %v659 = vpop.permute.xlu0 %658
      %vm660 = vcmp.eq.s32.totalorder %v659, 1
      %v661 = vsel %vm660, %v655, 0.0
      %v662 = vsel %vm660, %v655, %v373
      %s663 = smul.addr %s632, 8
      %s664 = scalar_lea.vmem [#allocation7], %s663
      %v665 = vld [vmem:[%s664] sm:$0xff]
      %v666 = vld [vmem:[%s664 + $0x8] sm:$0xff]
      %v667 = vld [vmem:[%s664 + $0x10] sm:$0xff]
      %v668 = vadd.f32 %v665, %v590
      %v669 = vmul.f32 %v668, 0.5
      %v670 = vtanh.pop %v669
      %v671 = vadd.f32 %v670, 1.0
      %v672 = vmul.f32 %v671, 0.5
      %v673 = vadd.f32 %v666, %v610
      %v674 = vmul.f32 %v673, 0.5
      %v675 = vtanh.pop %v674
      %v676 = vadd.f32 %v675, 1.0
      %v677 = vmul.f32 %v676, 0.5
      %v678 = vadd.f32 %v630, %v109
      %v679 = vmul.f32 %v672, %v678
      %v680 = vadd.f32 %v667, %v679
      %v681 = vtanh.pop %v680
      %v682 = vsub.f32 1.0, %v677
      %v683 = vmul.f32 %v682, %v681
      %v684 = vmul.f32 %v677, %v403
      %v685 = vadd.f32 %v683, %v684
      %v686 = vsel %vm415, 1, 0
      %687 = vset.pattern.permute.xlu0 0
      %688 = vperm.xlu0 %687, %v686
      %v689 = vpop.permute.xlu0 %688
      %vm690 = vcmp.eq.s32.totalorder %v689, 1
      %v691 = vsel %vm690, %v685, 0.0
      %v692 = vsel %vm690, %v685, %v403
      %s693 = smul.u32 %s411, 8
      %s694 = scalar_lea.vmem [#allocation12], %s693
      %695 = vst [vmem:[%s694] sm:$0xff] %v661
      %s696 = ssub.s32 6, %s122
      %s697 = smul.u32 %s696, 8
      %s698 = scalar_lea.vmem [#allocation13], %s697
      %699 = vst [vmem:[%s698] sm:$0xff] %v691
      %s700 = sadd.s32 %s122, 2
      %s701 = sadd.s32 %s111, %s700
      %v702 = vstv %s701
      %vm703 = vcmp.lt.s32.totalorder %v702, %v101
      %vm704 = vcmp.ge.s32.totalorder %v702, %v102
      %v705 = vld [vmem:[#allocation9] sm:$0xff]
      %v706 = vld [vmem:[#allocation9 + $0x8] sm:$0xff]
      %v707 = vld [vmem:[#allocation9 + $0x10] sm:$0xff]
      %v708 = vld [vmem:[#allocation9 + $0x18] sm:$0xff]
      %v709 = vld [vmem:[#allocation9 + $0x20] sm:$0xff]
      %v710 = vld [vmem:[#allocation9 + $0x28] sm:$0xff]
      %v711 = vld [vmem:[#allocation9 + $0x30] sm:$0xff]
      %v712 = vld [vmem:[#allocation9 + $0x38] sm:$0xff]
      %v713 = vld [vmem:[#allocation9 + $0x40] sm:$0xff]
      %v714 = vld [vmem:[#allocation9 + $0x48] sm:$0xff]
      %v715 = vld [vmem:[#allocation9 + $0x50] sm:$0xff]
      %v716 = vld [vmem:[#allocation9 + $0x58] sm:$0xff]
      %v717 = vld [vmem:[#allocation9 + $0x60] sm:$0xff]
      %v718 = vld [vmem:[#allocation9 + $0x68] sm:$0xff]
      %v719 = vld [vmem:[#allocation9 + $0x70] sm:$0xff]
      %v720 = vld [vmem:[#allocation9 + $0x78] sm:$0xff]
      %v721 = vld [vmem:[#allocation9 + $0x80] sm:$0xff]
      %v722 = vld [vmem:[#allocation9 + $0x88] sm:$0xff]
      %v723 = vld [vmem:[#allocation9 + $0x90] sm:$0xff]
      %v724 = vld [vmem:[#allocation9 + $0x98] sm:$0xff]
      %v725 = vld [vmem:[#allocation9 + $0xa0] sm:$0xff]
      %v726 = vld [vmem:[#allocation9 + $0xa8] sm:$0xff]
      %v727 = vld [vmem:[#allocation9 + $0xb0] sm:$0xff]
      %v728 = vld [vmem:[#allocation9 + $0xb8] sm:$0xff]
      %v729 = vld [vmem:[#allocation9 + $0xc0] sm:$0xff]
      %v730 = vld [vmem:[#allocation9 + $0xc8] sm:$0xff]
      %v731 = vld [vmem:[#allocation9 + $0xd0] sm:$0xff]
      %v732 = vld [vmem:[#allocation9 + $0xd8] sm:$0xff]
      %v733 = vld [vmem:[#allocation9 + $0xe0] sm:$0xff]
      %v734 = vld [vmem:[#allocation9 + $0xe8] sm:$0xff]
      %v735 = vld [vmem:[#allocation9 + $0xf0] sm:$0xff]
      %v736 = vld [vmem:[#allocation9 + $0xf8] sm:$0xff]
      %v737 = vld [vmem:[#allocation9 + $0x100] sm:$0xff]
      %v738 = vld [vmem:[#allocation9 + $0x108] sm:$0xff]
      %v739 = vld [vmem:[#allocation9 + $0x110] sm:$0xff]
      %v740 = vld [vmem:[#allocation9 + $0x118] sm:$0xff]
      %v741 = vld [vmem:[#allocation9 + $0x120] sm:$0xff]
      %v742 = vld [vmem:[#allocation9 + $0x128] sm:$0xff]
      %v743 = vld [vmem:[#allocation9 + $0x130] sm:$0xff]
      %v744 = vld [vmem:[#allocation9 + $0x138] sm:$0xff]
      %v745 = vld [vmem:[#allocation9 + $0x140] sm:$0xff]
      %v746 = vld [vmem:[#allocation9 + $0x148] sm:$0xff]
      %v747 = vld [vmem:[#allocation9 + $0x150] sm:$0xff]
      %v748 = vld [vmem:[#allocation9 + $0x158] sm:$0xff]
      %v749 = vld [vmem:[#allocation9 + $0x160] sm:$0xff]
      %v750 = vld [vmem:[#allocation9 + $0x168] sm:$0xff]
      %v751 = vld [vmem:[#allocation9 + $0x170] sm:$0xff]
      %v752 = vld [vmem:[#allocation9 + $0x178] sm:$0xff]
      %753 = vmatpush.msra.mxu0 %v750
      %754 = vmatpush.msra.mxu0 %v747
      %755 = vmatpush.msra.mxu0 %v744
      %756 = vmatpush.msra.mxu0 %v741
      %757 = vmatpush.msra.mxu0 %v738
      %758 = vmatpush.msra.mxu0 %v735
      %759 = vmatpush.msra.mxu0 %v732
      %760 = vmatpush.msra.mxu0 %v729
      %761 = vmatpush.msra.mxu0 %v726
      %762 = vmatpush.msra.mxu0 %v723
      %763 = vmatpush.msra.mxu0 %v720
      %764 = vmatpush.msra.mxu0 %v717
      %765 = vmatpush.msra.mxu0 %v714
      %766 = vmatpush.msra.mxu0 %v711
      %767 = vmatpush.msra.mxu0 %v708
      %768 = vmatpush.msra.mxu0 %v705
      %769 = vmatmul.f32.gmra.mxu0 %v662
      %v770 = vpop.f32.mrf.mxu0
      %v771 = vadd.f32 0.0, %v770
      %772 = vdwg.mxu0
      %773 = vmatpush.msra.mxu0 %v751
      %774 = vmatpush.msra.mxu0 %v748
      %775 = vmatpush.msra.mxu0 %v745
      %776 = vmatpush.msra.mxu0 %v742
      %777 = vmatpush.msra.mxu0 %v739
      %778 = vmatpush.msra.mxu0 %v736
      %779 = vmatpush.msra.mxu0 %v733
      %780 = vmatpush.msra.mxu0 %v730
      %781 = vmatpush.msra.mxu0 %v727
      %782 = vmatpush.msra.mxu0 %v724
      %783 = vmatpush.msra.mxu0 %v721
      %784 = vmatpush.msra.mxu0 %v718
      %785 = vmatpush.msra.mxu0 %v715
      %786 = vmatpush.msra.mxu0 %v712
      %787 = vmatpush.msra.mxu0 %v709
      %788 = vmatpush.msra.mxu0 %v706
      %789 = vmatmul.f32.gmra.mxu0 %v662
      %v790 = vpop.f32.mrf.mxu0
      %v791 = vadd.f32 0.0, %v790
      %792 = vdwg.mxu0
      %793 = vmatpush.msra.mxu0 %v752
      %794 = vmatpush.msra.mxu0 %v749
      %795 = vmatpush.msra.mxu0 %v746
      %796 = vmatpush.msra.mxu0 %v743
      %797 = vmatpush.msra.mxu0 %v740
      %798 = vmatpush.msra.mxu0 %v737
      %799 = vmatpush.msra.mxu0 %v734
      %800 = vmatpush.msra.mxu0 %v731
      %801 = vmatpush.msra.mxu0 %v728
      %802 = vmatpush.msra.mxu0 %v725
      %803 = vmatpush.msra.mxu0 %v722
      %804 = vmatpush.msra.mxu0 %v719
      %805 = vmatpush.msra.mxu0 %v716
      %806 = vmatpush.msra.mxu0 %v713
      %807 = vmatpush.msra.mxu0 %v710
      %808 = vmatpush.msra.mxu0 %v707
      %809 = vmatmul.f32.gmra.mxu0 %v662
      %v810 = vpop.f32.mrf.mxu0
      %v811 = vadd.f32 0.0, %v810
      %812 = vdwg.mxu0
      %v813 = vld [vmem:[#allocation10] sm:$0xff]
      %v814 = vld [vmem:[#allocation10 + $0x8] sm:$0xff]
      %v815 = vld [vmem:[#allocation10 + $0x10] sm:$0xff]
      %v816 = vld [vmem:[#allocation10 + $0x18] sm:$0xff]
      %v817 = vld [vmem:[#allocation10 + $0x20] sm:$0xff]
      %v818 = vld [vmem:[#allocation10 + $0x28] sm:$0xff]
      %v819 = vld [vmem:[#allocation10 + $0x30] sm:$0xff]
      %v820 = vld [vmem:[#allocation10 + $0x38] sm:$0xff]
      %v821 = vld [vmem:[#allocation10 + $0x40] sm:$0xff]
      %v822 = vld [vmem:[#allocation10 + $0x48] sm:$0xff]
      %v823 = vld [vmem:[#allocation10 + $0x50] sm:$0xff]
      %v824 = vld [vmem:[#allocation10 + $0x58] sm:$0xff]
      %v825 = vld [vmem:[#allocation10 + $0x60] sm:$0xff]
      %v826 = vld [vmem:[#allocation10 + $0x68] sm:$0xff]
      %v827 = vld [vmem:[#allocation10 + $0x70] sm:$0xff]
      %v828 = vld [vmem:[#allocation10 + $0x78] sm:$0xff]
      %v829 = vld [vmem:[#allocation10 + $0x80] sm:$0xff]
      %v830 = vld [vmem:[#allocation10 + $0x88] sm:$0xff]
      %v831 = vld [vmem:[#allocation10 + $0x90] sm:$0xff]
      %v832 = vld [vmem:[#allocation10 + $0x98] sm:$0xff]
      %v833 = vld [vmem:[#allocation10 + $0xa0] sm:$0xff]
      %v834 = vld [vmem:[#allocation10 + $0xa8] sm:$0xff]
      %v835 = vld [vmem:[#allocation10 + $0xb0] sm:$0xff]
      %v836 = vld [vmem:[#allocation10 + $0xb8] sm:$0xff]
      %v837 = vld [vmem:[#allocation10 + $0xc0] sm:$0xff]
      %v838 = vld [vmem:[#allocation10 + $0xc8] sm:$0xff]
      %v839 = vld [vmem:[#allocation10 + $0xd0] sm:$0xff]
      %v840 = vld [vmem:[#allocation10 + $0xd8] sm:$0xff]
      %v841 = vld [vmem:[#allocation10 + $0xe0] sm:$0xff]
      %v842 = vld [vmem:[#allocation10 + $0xe8] sm:$0xff]
      %v843 = vld [vmem:[#allocation10 + $0xf0] sm:$0xff]
      %v844 = vld [vmem:[#allocation10 + $0xf8] sm:$0xff]
      %v845 = vld [vmem:[#allocation10 + $0x100] sm:$0xff]
      %v846 = vld [vmem:[#allocation10 + $0x108] sm:$0xff]
      %v847 = vld [vmem:[#allocation10 + $0x110] sm:$0xff]
      %v848 = vld [vmem:[#allocation10 + $0x118] sm:$0xff]
      %v849 = vld [vmem:[#allocation10 + $0x120] sm:$0xff]
      %v850 = vld [vmem:[#allocation10 + $0x128] sm:$0xff]
      %v851 = vld [vmem:[#allocation10 + $0x130] sm:$0xff]
      %v852 = vld [vmem:[#allocation10 + $0x138] sm:$0xff]
      %v853 = vld [vmem:[#allocation10 + $0x140] sm:$0xff]
      %v854 = vld [vmem:[#allocation10 + $0x148] sm:$0xff]
      %v855 = vld [vmem:[#allocation10 + $0x150] sm:$0xff]
      %v856 = vld [vmem:[#allocation10 + $0x158] sm:$0xff]
      %v857 = vld [vmem:[#allocation10 + $0x160] sm:$0xff]
      %v858 = vld [vmem:[#allocation10 + $0x168] sm:$0xff]
      %v859 = vld [vmem:[#allocation10 + $0x170] sm:$0xff]
      %v860 = vld [vmem:[#allocation10 + $0x178] sm:$0xff]
      %861 = vmatpush.msra.mxu0 %v858
      %862 = vmatpush.msra.mxu0 %v855
      %863 = vmatpush.msra.mxu0 %v852
      %864 = vmatpush.msra.mxu0 %v849
      %865 = vmatpush.msra.mxu0 %v846
      %866 = vmatpush.msra.mxu0 %v843
      %867 = vmatpush.msra.mxu0 %v840
      %868 = vmatpush.msra.mxu0 %v837
      %869 = vmatpush.msra.mxu0 %v834
      %870 = vmatpush.msra.mxu0 %v831
      %871 = vmatpush.msra.mxu0 %v828
      %872 = vmatpush.msra.mxu0 %v825
      %873 = vmatpush.msra.mxu0 %v822
      %874 = vmatpush.msra.mxu0 %v819
      %875 = vmatpush.msra.mxu0 %v816
      %876 = vmatpush.msra.mxu0 %v813
      %877 = vmatmul.f32.gmra.mxu0 %v692
      %v878 = vpop.f32.mrf.mxu0
      %v879 = vadd.f32 0.0, %v878
      %880 = vdwg.mxu0
      %881 = vmatpush.msra.mxu0 %v859
      %882 = vmatpush.msra.mxu0 %v856
      %883 = vmatpush.msra.mxu0 %v853
      %884 = vmatpush.msra.mxu0 %v850
      %885 = vmatpush.msra.mxu0 %v847
      %886 = vmatpush.msra.mxu0 %v844
      %887 = vmatpush.msra.mxu0 %v841
      %888 = vmatpush.msra.mxu0 %v838
      %889 = vmatpush.msra.mxu0 %v835
      %890 = vmatpush.msra.mxu0 %v832
      %891 = vmatpush.msra.mxu0 %v829
      %892 = vmatpush.msra.mxu0 %v826
      %893 = vmatpush.msra.mxu0 %v823
      %894 = vmatpush.msra.mxu0 %v820
      %895 = vmatpush.msra.mxu0 %v817
      %896 = vmatpush.msra.mxu0 %v814
      %897 = vmatmul.f32.gmra.mxu0 %v692
      %v898 = vpop.f32.mrf.mxu0
      %v899 = vadd.f32 0.0, %v898
      %900 = vdwg.mxu0
      %901 = vmatpush.msra.mxu0 %v860
      %902 = vmatpush.msra.mxu0 %v857
      %903 = vmatpush.msra.mxu0 %v854
      %904 = vmatpush.msra.mxu0 %v851
      %905 = vmatpush.msra.mxu0 %v848
      %906 = vmatpush.msra.mxu0 %v845
      %907 = vmatpush.msra.mxu0 %v842
      %908 = vmatpush.msra.mxu0 %v839
      %909 = vmatpush.msra.mxu0 %v836
      %910 = vmatpush.msra.mxu0 %v833
      %911 = vmatpush.msra.mxu0 %v830
      %912 = vmatpush.msra.mxu0 %v827
      %913 = vmatpush.msra.mxu0 %v824
      %914 = vmatpush.msra.mxu0 %v821
      %915 = vmatpush.msra.mxu0 %v818
      %916 = vmatpush.msra.mxu0 %v815
      %917 = vmatmul.f32.gmra.mxu0 %v692
      %v918 = vpop.f32.mrf.mxu0
      %v919 = vadd.f32 0.0, %v918
      %920 = vdwg.mxu0
      %s921 = smul.u32 %s700, 3
      %s922 = smul.addr %s921, 8
      %s923 = scalar_lea.vmem [#allocation4], %s922
      %v924 = vld [vmem:[%s923] sm:$0xff]
      %v925 = vld [vmem:[%s923 + $0x8] sm:$0xff]
      %v926 = vld [vmem:[%s923 + $0x10] sm:$0xff]
      %v927 = vadd.f32 %v924, %v771
      %v928 = vmul.f32 %v927, 0.5
      %v929 = vtanh.pop %v928
      %v930 = vadd.f32 %v929, 1.0
      %v931 = vmul.f32 %v930, 0.5
      %v932 = vadd.f32 %v925, %v791
      %v933 = vmul.f32 %v932, 0.5
      %v934 = vtanh.pop %v933
      %v935 = vadd.f32 %v934, 1.0
      %v936 = vmul.f32 %v935, 0.5
      %v937 = vadd.f32 %v811, %v105
      %v938 = vmul.f32 %v931, %v937
      %v939 = vadd.f32 %v926, %v938
      %v940 = vtanh.pop %v939
      %v941 = vsub.f32 1.0, %v936
      %v942 = vmul.f32 %v941, %v940
      %v943 = vmul.f32 %v936, %v662
      %v944 = vadd.f32 %v942, %v943
      %v945 = vsel %vm703, 1, 0
      %946 = vset.pattern.permute.xlu0 0
      %947 = vperm.xlu0 %946, %v945
      %v948 = vpop.permute.xlu0 %947
      %vm949 = vcmp.eq.s32.totalorder %v948, 1
      %v950 = vsel %vm949, %v944, 0.0
      %v951 = vsel %vm949, %v944, %v662
      %s952 = smul.addr %s921, 8
      %s953 = scalar_lea.vmem [#allocation7], %s952
      %v954 = vld [vmem:[%s953] sm:$0xff]
      %v955 = vld [vmem:[%s953 + $0x8] sm:$0xff]
      %v956 = vld [vmem:[%s953 + $0x10] sm:$0xff]
      %v957 = vadd.f32 %v954, %v879
      %v958 = vmul.f32 %v957, 0.5
      %v959 = vtanh.pop %v958
      %v960 = vadd.f32 %v959, 1.0
      %v961 = vmul.f32 %v960, 0.5
      %v962 = vadd.f32 %v955, %v899
      %v963 = vmul.f32 %v962, 0.5
      %v964 = vtanh.pop %v963
      %v965 = vadd.f32 %v964, 1.0
      %v966 = vmul.f32 %v965, 0.5
      %v967 = vadd.f32 %v919, %v109
      %v968 = vmul.f32 %v961, %v967
      %v969 = vadd.f32 %v956, %v968
      %v970 = vtanh.pop %v969
      %v971 = vsub.f32 1.0, %v966
      %v972 = vmul.f32 %v971, %v970
      %v973 = vmul.f32 %v966, %v692
      %v974 = vadd.f32 %v972, %v973
      %v975 = vsel %vm704, 1, 0
      %976 = vset.pattern.permute.xlu0 0
      %977 = vperm.xlu0 %976, %v975
      %v978 = vpop.permute.xlu0 %977
      %vm979 = vcmp.eq.s32.totalorder %v978, 1
      %v980 = vsel %vm979, %v974, 0.0
      %v981 = vsel %vm979, %v974, %v692
      %s982 = smul.u32 %s700, 8
      %s983 = scalar_lea.vmem [#allocation12], %s982
      %984 = vst [vmem:[%s983] sm:$0xff] %v950
      %s985 = ssub.s32 5, %s122
      %s986 = smul.u32 %s985, 8
      %s987 = scalar_lea.vmem [#allocation13], %s986
      %988 = vst [vmem:[%s987] sm:$0xff] %v980
      %s989 = sadd.s32 %s122, 3
      %s990 = sadd.s32 %s111, %s989
      %v991 = vstv %s990
      %vm992 = vcmp.lt.s32.totalorder %v991, %v101
      %vm993 = vcmp.ge.s32.totalorder %v991, %v102
      %v994 = vld [vmem:[#allocation9] sm:$0xff]
      %v995 = vld [vmem:[#allocation9 + $0x8] sm:$0xff]
      %v996 = vld [vmem:[#allocation9 + $0x10] sm:$0xff]
      %v997 = vld [vmem:[#allocation9 + $0x18] sm:$0xff]
      %v998 = vld [vmem:[#allocation9 + $0x20] sm:$0xff]
      %v999 = vld [vmem:[#allocation9 + $0x28] sm:$0xff]
      %v1000 = vld [vmem:[#allocation9 + $0x30] sm:$0xff]
      %v1001 = vld [vmem:[#allocation9 + $0x38] sm:$0xff]
      %v1002 = vld [vmem:[#allocation9 + $0x40] sm:$0xff]
      %v1003 = vld [vmem:[#allocation9 + $0x48] sm:$0xff]
      %v1004 = vld [vmem:[#allocation9 + $0x50] sm:$0xff]
      %v1005 = vld [vmem:[#allocation9 + $0x58] sm:$0xff]
      %v1006 = vld [vmem:[#allocation9 + $0x60] sm:$0xff]
      %v1007 = vld [vmem:[#allocation9 + $0x68] sm:$0xff]
      %v1008 = vld [vmem:[#allocation9 + $0x70] sm:$0xff]
      %v1009 = vld [vmem:[#allocation9 + $0x78] sm:$0xff]
      %v1010 = vld [vmem:[#allocation9 + $0x80] sm:$0xff]
      %v1011 = vld [vmem:[#allocation9 + $0x88] sm:$0xff]
      %v1012 = vld [vmem:[#allocation9 + $0x90] sm:$0xff]
      %v1013 = vld [vmem:[#allocation9 + $0x98] sm:$0xff]
      %v1014 = vld [vmem:[#allocation9 + $0xa0] sm:$0xff]
      %v1015 = vld [vmem:[#allocation9 + $0xa8] sm:$0xff]
      %v1016 = vld [vmem:[#allocation9 + $0xb0] sm:$0xff]
      %v1017 = vld [vmem:[#allocation9 + $0xb8] sm:$0xff]
      %v1018 = vld [vmem:[#allocation9 + $0xc0] sm:$0xff]
      %v1019 = vld [vmem:[#allocation9 + $0xc8] sm:$0xff]
      %v1020 = vld [vmem:[#allocation9 + $0xd0] sm:$0xff]
      %v1021 = vld [vmem:[#allocation9 + $0xd8] sm:$0xff]
      %v1022 = vld [vmem:[#allocation9 + $0xe0] sm:$0xff]
      %v1023 = vld [vmem:[#allocation9 + $0xe8] sm:$0xff]
      %v1024 = vld [vmem:[#allocation9 + $0xf0] sm:$0xff]
      %v1025 = vld [vmem:[#allocation9 + $0xf8] sm:$0xff]
      %v1026 = vld [vmem:[#allocation9 + $0x100] sm:$0xff]
      %v1027 = vld [vmem:[#allocation9 + $0x108] sm:$0xff]
      %v1028 = vld [vmem:[#allocation9 + $0x110] sm:$0xff]
      %v1029 = vld [vmem:[#allocation9 + $0x118] sm:$0xff]
      %v1030 = vld [vmem:[#allocation9 + $0x120] sm:$0xff]
      %v1031 = vld [vmem:[#allocation9 + $0x128] sm:$0xff]
      %v1032 = vld [vmem:[#allocation9 + $0x130] sm:$0xff]
      %v1033 = vld [vmem:[#allocation9 + $0x138] sm:$0xff]
      %v1034 = vld [vmem:[#allocation9 + $0x140] sm:$0xff]
      %v1035 = vld [vmem:[#allocation9 + $0x148] sm:$0xff]
      %v1036 = vld [vmem:[#allocation9 + $0x150] sm:$0xff]
      %v1037 = vld [vmem:[#allocation9 + $0x158] sm:$0xff]
      %v1038 = vld [vmem:[#allocation9 + $0x160] sm:$0xff]
      %v1039 = vld [vmem:[#allocation9 + $0x168] sm:$0xff]
      %v1040 = vld [vmem:[#allocation9 + $0x170] sm:$0xff]
      %v1041 = vld [vmem:[#allocation9 + $0x178] sm:$0xff]
      %1042 = vmatpush.msra.mxu0 %v1039
      %1043 = vmatpush.msra.mxu0 %v1036
      %1044 = vmatpush.msra.mxu0 %v1033
      %1045 = vmatpush.msra.mxu0 %v1030
      %1046 = vmatpush.msra.mxu0 %v1027
      %1047 = vmatpush.msra.mxu0 %v1024
      %1048 = vmatpush.msra.mxu0 %v1021
      %1049 = vmatpush.msra.mxu0 %v1018
      %1050 = vmatpush.msra.mxu0 %v1015
      %1051 = vmatpush.msra.mxu0 %v1012
      %1052 = vmatpush.msra.mxu0 %v1009
      %1053 = vmatpush.msra.mxu0 %v1006
      %1054 = vmatpush.msra.mxu0 %v1003
      %1055 = vmatpush.msra.mxu0 %v1000
      %1056 = vmatpush.msra.mxu0 %v997
      %1057 = vmatpush.msra.mxu0 %v994
      %1058 = vmatmul.f32.gmra.mxu0 %v951
      %v1059 = vpop.f32.mrf.mxu0
      %v1060 = vadd.f32 0.0, %v1059
      %1061 = vdwg.mxu0
      %1062 = vmatpush.msra.mxu0 %v1040
      %1063 = vmatpush.msra.mxu0 %v1037
      %1064 = vmatpush.msra.mxu0 %v1034
      %1065 = vmatpush.msra.mxu0 %v1031
      %1066 = vmatpush.msra.mxu0 %v1028
      %1067 = vmatpush.msra.mxu0 %v1025
      %1068 = vmatpush.msra.mxu0 %v1022
      %1069 = vmatpush.msra.mxu0 %v1019
      %1070 = vmatpush.msra.mxu0 %v1016
      %1071 = vmatpush.msra.mxu0 %v1013
      %1072 = vmatpush.msra.mxu0 %v1010
      %1073 = vmatpush.msra.mxu0 %v1007
      %1074 = vmatpush.msra.mxu0 %v1004
      %1075 = vmatpush.msra.mxu0 %v1001
      %1076 = vmatpush.msra.mxu0 %v998
      %1077 = vmatpush.msra.mxu0 %v995
      %1078 = vmatmul.f32.gmra.mxu0 %v951
      %v1079 = vpop.f32.mrf.mxu0
      %v1080 = vadd.f32 0.0, %v1079
      %1081 = vdwg.mxu0
      %1082 = vmatpush.msra.mxu0 %v1041
      %1083 = vmatpush.msra.mxu0 %v1038
      %1084 = vmatpush.msra.mxu0 %v1035
      %1085 = vmatpush.msra.mxu0 %v1032
      %1086 = vmatpush.msra.mxu0 %v1029
      %1087 = vmatpush.msra.mxu0 %v1026
      %1088 = vmatpush.msra.mxu0 %v1023
      %1089 = vmatpush.msra.mxu0 %v1020
      %1090 = vmatpush.msra.mxu0 %v1017
      %1091 = vmatpush.msra.mxu0 %v1014
      %1092 = vmatpush.msra.mxu0 %v1011
      %1093 = vmatpush.msra.mxu0 %v1008
      %1094 = vmatpush.msra.mxu0 %v1005
      %1095 = vmatpush.msra.mxu0 %v1002
      %1096 = vmatpush.msra.mxu0 %v999
      %1097 = vmatpush.msra.mxu0 %v996
      %1098 = vmatmul.f32.gmra.mxu0 %v951
      %v1099 = vpop.f32.mrf.mxu0
      %v1100 = vadd.f32 0.0, %v1099
      %1101 = vdwg.mxu0
      %v1102 = vld [vmem:[#allocation10] sm:$0xff]
      %v1103 = vld [vmem:[#allocation10 + $0x8] sm:$0xff]
      %v1104 = vld [vmem:[#allocation10 + $0x10] sm:$0xff]
      %v1105 = vld [vmem:[#allocation10 + $0x18] sm:$0xff]
      %v1106 = vld [vmem:[#allocation10 + $0x20] sm:$0xff]
      %v1107 = vld [vmem:[#allocation10 + $0x28] sm:$0xff]
      %v1108 = vld [vmem:[#allocation10 + $0x30] sm:$0xff]
      %v1109 = vld [vmem:[#allocation10 + $0x38] sm:$0xff]
      %v1110 = vld [vmem:[#allocation10 + $0x40] sm:$0xff]
      %v1111 = vld [vmem:[#allocation10 + $0x48] sm:$0xff]
      %v1112 = vld [vmem:[#allocation10 + $0x50] sm:$0xff]
      %v1113 = vld [vmem:[#allocation10 + $0x58] sm:$0xff]
      %v1114 = vld [vmem:[#allocation10 + $0x60] sm:$0xff]
      %v1115 = vld [vmem:[#allocation10 + $0x68] sm:$0xff]
      %v1116 = vld [vmem:[#allocation10 + $0x70] sm:$0xff]
      %v1117 = vld [vmem:[#allocation10 + $0x78] sm:$0xff]
      %v1118 = vld [vmem:[#allocation10 + $0x80] sm:$0xff]
      %v1119 = vld [vmem:[#allocation10 + $0x88] sm:$0xff]
      %v1120 = vld [vmem:[#allocation10 + $0x90] sm:$0xff]
      %v1121 = vld [vmem:[#allocation10 + $0x98] sm:$0xff]
      %v1122 = vld [vmem:[#allocation10 + $0xa0] sm:$0xff]
      %v1123 = vld [vmem:[#allocation10 + $0xa8] sm:$0xff]
      %v1124 = vld [vmem:[#allocation10 + $0xb0] sm:$0xff]
      %v1125 = vld [vmem:[#allocation10 + $0xb8] sm:$0xff]
      %v1126 = vld [vmem:[#allocation10 + $0xc0] sm:$0xff]
      %v1127 = vld [vmem:[#allocation10 + $0xc8] sm:$0xff]
      %v1128 = vld [vmem:[#allocation10 + $0xd0] sm:$0xff]
      %v1129 = vld [vmem:[#allocation10 + $0xd8] sm:$0xff]
      %v1130 = vld [vmem:[#allocation10 + $0xe0] sm:$0xff]
      %v1131 = vld [vmem:[#allocation10 + $0xe8] sm:$0xff]
      %v1132 = vld [vmem:[#allocation10 + $0xf0] sm:$0xff]
      %v1133 = vld [vmem:[#allocation10 + $0xf8] sm:$0xff]
      %v1134 = vld [vmem:[#allocation10 + $0x100] sm:$0xff]
      %v1135 = vld [vmem:[#allocation10 + $0x108] sm:$0xff]
      %v1136 = vld [vmem:[#allocation10 + $0x110] sm:$0xff]
      %v1137 = vld [vmem:[#allocation10 + $0x118] sm:$0xff]
      %v1138 = vld [vmem:[#allocation10 + $0x120] sm:$0xff]
      %v1139 = vld [vmem:[#allocation10 + $0x128] sm:$0xff]
      %v1140 = vld [vmem:[#allocation10 + $0x130] sm:$0xff]
      %v1141 = vld [vmem:[#allocation10 + $0x138] sm:$0xff]
      %v1142 = vld [vmem:[#allocation10 + $0x140] sm:$0xff]
      %v1143 = vld [vmem:[#allocation10 + $0x148] sm:$0xff]
      %v1144 = vld [vmem:[#allocation10 + $0x150] sm:$0xff]
      %v1145 = vld [vmem:[#allocation10 + $0x158] sm:$0xff]
      %v1146 = vld [vmem:[#allocation10 + $0x160] sm:$0xff]
      %v1147 = vld [vmem:[#allocation10 + $0x168] sm:$0xff]
      %v1148 = vld [vmem:[#allocation10 + $0x170] sm:$0xff]
      %v1149 = vld [vmem:[#allocation10 + $0x178] sm:$0xff]
      %1150 = vmatpush.msra.mxu0 %v1147
      %1151 = vmatpush.msra.mxu0 %v1144
      %1152 = vmatpush.msra.mxu0 %v1141
      %1153 = vmatpush.msra.mxu0 %v1138
      %1154 = vmatpush.msra.mxu0 %v1135
      %1155 = vmatpush.msra.mxu0 %v1132
      %1156 = vmatpush.msra.mxu0 %v1129
      %1157 = vmatpush.msra.mxu0 %v1126
      %1158 = vmatpush.msra.mxu0 %v1123
      %1159 = vmatpush.msra.mxu0 %v1120
      %1160 = vmatpush.msra.mxu0 %v1117
      %1161 = vmatpush.msra.mxu0 %v1114
      %1162 = vmatpush.msra.mxu0 %v1111
      %1163 = vmatpush.msra.mxu0 %v1108
      %1164 = vmatpush.msra.mxu0 %v1105
      %1165 = vmatpush.msra.mxu0 %v1102
      %1166 = vmatmul.f32.gmra.mxu0 %v981
      %v1167 = vpop.f32.mrf.mxu0
      %v1168 = vadd.f32 0.0, %v1167
      %1169 = vdwg.mxu0
      %1170 = vmatpush.msra.mxu0 %v1148
      %1171 = vmatpush.msra.mxu0 %v1145
      %1172 = vmatpush.msra.mxu0 %v1142
      %1173 = vmatpush.msra.mxu0 %v1139
      %1174 = vmatpush.msra.mxu0 %v1136
      %1175 = vmatpush.msra.mxu0 %v1133
      %1176 = vmatpush.msra.mxu0 %v1130
      %1177 = vmatpush.msra.mxu0 %v1127
      %1178 = vmatpush.msra.mxu0 %v1124
      %1179 = vmatpush.msra.mxu0 %v1121
      %1180 = vmatpush.msra.mxu0 %v1118
      %1181 = vmatpush.msra.mxu0 %v1115
      %1182 = vmatpush.msra.mxu0 %v1112
      %1183 = vmatpush.msra.mxu0 %v1109
      %1184 = vmatpush.msra.mxu0 %v1106
      %1185 = vmatpush.msra.mxu0 %v1103
      %1186 = vmatmul.f32.gmra.mxu0 %v981
      %v1187 = vpop.f32.mrf.mxu0
      %v1188 = vadd.f32 0.0, %v1187
      %1189 = vdwg.mxu0
      %1190 = vmatpush.msra.mxu0 %v1149
      %1191 = vmatpush.msra.mxu0 %v1146
      %1192 = vmatpush.msra.mxu0 %v1143
      %1193 = vmatpush.msra.mxu0 %v1140
      %1194 = vmatpush.msra.mxu0 %v1137
      %1195 = vmatpush.msra.mxu0 %v1134
      %1196 = vmatpush.msra.mxu0 %v1131
      %1197 = vmatpush.msra.mxu0 %v1128
      %1198 = vmatpush.msra.mxu0 %v1125
      %1199 = vmatpush.msra.mxu0 %v1122
      %1200 = vmatpush.msra.mxu0 %v1119
      %1201 = vmatpush.msra.mxu0 %v1116
      %1202 = vmatpush.msra.mxu0 %v1113
      %1203 = vmatpush.msra.mxu0 %v1110
      %1204 = vmatpush.msra.mxu0 %v1107
      %1205 = vmatpush.msra.mxu0 %v1104
      %1206 = vmatmul.f32.gmra.mxu0 %v981
      %v1207 = vpop.f32.mrf.mxu0
      %v1208 = vadd.f32 0.0, %v1207
      %1209 = vdwg.mxu0
      %s1210 = smul.u32 %s989, 3
      %s1211 = smul.addr %s1210, 8
      %s1212 = scalar_lea.vmem [#allocation4], %s1211
      %v1213 = vld [vmem:[%s1212] sm:$0xff]
      %v1214 = vld [vmem:[%s1212 + $0x8] sm:$0xff]
      %v1215 = vld [vmem:[%s1212 + $0x10] sm:$0xff]
      %v1216 = vadd.f32 %v1213, %v1060
      %v1217 = vmul.f32 %v1216, 0.5
      %v1218 = vtanh.pop %v1217
      %v1219 = vadd.f32 %v1218, 1.0
      %v1220 = vmul.f32 %v1219, 0.5
      %v1221 = vadd.f32 %v1214, %v1080
      %v1222 = vmul.f32 %v1221, 0.5
      %v1223 = vtanh.pop %v1222
      %v1224 = vadd.f32 %v1223, 1.0
      %v1225 = vmul.f32 %v1224, 0.5
      %v1226 = vadd.f32 %v1100, %v105
      %v1227 = vmul.f32 %v1220, %v1226
      %v1228 = vadd.f32 %v1215, %v1227
      %v1229 = vtanh.pop %v1228
      %v1230 = vsub.f32 1.0, %v1225
      %v1231 = vmul.f32 %v1230, %v1229
      %v1232 = vmul.f32 %v1225, %v951
      %v1233 = vadd.f32 %v1231, %v1232
      %v1234 = vsel %vm992, 1, 0
      %1235 = vset.pattern.permute.xlu0 0
      %1236 = vperm.xlu0 %1235, %v1234
      %v1237 = vpop.permute.xlu0 %1236
      %vm1238 = vcmp.eq.s32.totalorder %v1237, 1
      %v1239 = vsel %vm1238, %v1233, 0.0
      %v1240 = vsel %vm1238, %v1233, %v951
      %s1241 = smul.addr %s1210, 8
      %s1242 = scalar_lea.vmem [#allocation7], %s1241
      %v1243 = vld [vmem:[%s1242] sm:$0xff]
      %v1244 = vld [vmem:[%s1242 + $0x8] sm:$0xff]
      %v1245 = vld [vmem:[%s1242 + $0x10] sm:$0xff]
      %v1246 = vadd.f32 %v1243, %v1168
      %v1247 = vmul.f32 %v1246, 0.5
      %v1248 = vtanh.pop %v1247
      %v1249 = vadd.f32 %v1248, 1.0
      %v1250 = vmul.f32 %v1249, 0.5
      %v1251 = vadd.f32 %v1244, %v1188
      %v1252 = vmul.f32 %v1251, 0.5
      %v1253 = vtanh.pop %v1252
      %v1254 = vadd.f32 %v1253, 1.0
      %v1255 = vmul.f32 %v1254, 0.5
      %v1256 = vadd.f32 %v1208, %v109
      %v1257 = vmul.f32 %v1250, %v1256
      %v1258 = vadd.f32 %v1245, %v1257
      %v1259 = vtanh.pop %v1258
      %v1260 = vsub.f32 1.0, %v1255
      %v1261 = vmul.f32 %v1260, %v1259
      %v1262 = vmul.f32 %v1255, %v981
      %v1263 = vadd.f32 %v1261, %v1262
      %v1264 = vsel %vm993, 1, 0
      %1265 = vset.pattern.permute.xlu0 0
      %1266 = vperm.xlu0 %1265, %v1264
      %v1267 = vpop.permute.xlu0 %1266
      %vm1268 = vcmp.eq.s32.totalorder %v1267, 1
      %v1269 = vsel %vm1268, %v1263, 0.0
      %v1270 = vsel %vm1268, %v1263, %v981
      %s1271 = smul.u32 %s989, 8
      %s1272 = scalar_lea.vmem [#allocation12], %s1271
      %1273 = vst [vmem:[%s1272] sm:$0xff] %v1239
      %s1274 = ssub.s32 4, %s122
      %s1275 = smul.u32 %s1274, 8
      %s1276 = scalar_lea.vmem [#allocation13], %s1275
      %1277 = vst [vmem:[%s1276] sm:$0xff] %v1269
    $region54: #{tpu_custom_call.1} parent=1 // loop_footer
      %s119 = sadd.s32 1, %s115
    $region55: #{tpu_custom_call.1} parent=1 // loop_footer_branch
      %114 = sbr.rel target = $region51
    $region56: #{tpu_custom_call.1} parent=1 // loop_exit
      _
    %1278 = vst [vmem:[#allocation2] sm:$0xff] %v120
    %1279 = vst [vmem:[#allocation3] sm:$0xff] %v121
    // Predicated region
    $region57: #{tpu_custom_call.1} parent=1 // pred_check
      _
    $region58: #{tpu_custom_call.1} parent=1 // pred_check_branch
      %1281 = sbr.rel (0) target = $region60
    $region59: #{tpu_custom_call.1} parent=1 // pred_region
      %1283 = vsyncadd [#allocation6], 0
      %s1284 = sshll.u32 [#allocation12], 4
      %s1285 = int_to_ptr.vmem [resolvable:$true] %s1284
      %s1286 = sshll.u32 %s7, 4
      %s1287 = int_to_ptr.hbm [resolvable:$true] %s1286
      %1292 = dma.vmem_to_hbm [thread:$0]  %s1285, 1024, %s1287, [#allocation6], 128, 128, 8
    $region60: #{tpu_custom_call.1} parent=1 // pred_fallthru
      _
    // Predicated region
    $region61: #{tpu_custom_call.1} parent=1 // pred_check
      _
    $region62: #{tpu_custom_call.1} parent=1 // pred_check_branch
      %1294 = sbr.rel (0) target = $region64
    $region63: #{tpu_custom_call.1} parent=1 // pred_region
      %s1295 = ssub.s32 0, 0
      %s1296 = smul.u32 8, %s1295
      %1298 = vsyncadd [#allocation14], 0
      %s1299 = smul.addr %s1296, 8
      %s1300 = scalar_lea.hbm %s8, %s1299
      %s1301 = sshll.u32 [#allocation13], 4
      %s1302 = int_to_ptr.vmem [resolvable:$true] %s1301
      %s1303 = sshll.u32 %s1300, 4
      %s1304 = int_to_ptr.hbm [resolvable:$true] %s1303
      %1309 = dma.vmem_to_hbm [thread:$0]  %s1302, 1024, %s1304, [#allocation14], 128, 128, 8
    $region64: #{tpu_custom_call.1} parent=1 // pred_fallthru
      _
    // Predicated region
    $region65: #{tpu_custom_call.1} parent=1 // pred_check
      _
    $region66: #{tpu_custom_call.1} parent=1 // pred_check_branch
      %1311 = sbr.rel (0) target = $region68
    $region67: #{tpu_custom_call.1} parent=1 // pred_region
      %1313 = dma.done [#allocation6], 1024
    $region68: #{tpu_custom_call.1} parent=1 // pred_fallthru
      _
    // Predicated region
    $region69: #{tpu_custom_call.1} parent=1 // pred_check
      _
    $region70: #{tpu_custom_call.1} parent=1 // pred_check_branch
      %1315 = sbr.rel (0) target = $region72
    $region71: #{tpu_custom_call.1} parent=1 // pred_region
      %1317 = dma.done [#allocation14], 1024
    $region72: #{tpu_custom_call.1} parent=1 // pred_fallthru
      _
    %1318 = vsyncpa [#allocation5], 1
    %1319 = vsyncpa [#allocation8], 1
    %1320 = vsyncpa [#allocation11], 1
    %1321 = vsyncpa [#allocation6], 1
    %1322 = vsyncpa [#allocation14], 1

</llo_original>
